<compile_context>
chip_gen: v7x
topology: tpu7x:2x2x1
jax: 0.10.0
libtpu: 0.0.40
codegen_flags: <defaults>
</compile_context>

<pallas_src>
import functools

import jax
import jax.numpy as jnp
from jax import lax
from jax.experimental import pallas as pl
from jax.experimental.pallas import tpu as pltpu


# ----------------------------------------------------------------------------
# Generation-aware knobs: bf16 EUP/VPU availability and VMEM budget.
# ----------------------------------------------------------------------------
def _device_profile():
    try:
        kind = jax.devices()[0].device_kind.lower()
    except Exception:
        kind = ""
    is_v7 = ("v7" in kind) or ("7x" in kind)
    is_v6 = "v6" in kind
    is_v5 = "v5" in kind
    is_v4 = "v4" in kind
    bf16_eup = is_v6 or is_v7            # v5e / v4 have no bf16 VPU/EUP path
    if is_v7:
        vmem_limit = 48 << 20            # 64 MiB physical -> leave headroom
    elif is_v6 or is_v5 or is_v4:
        vmem_limit = 100 << 20           # 128 MiB physical, raise default scope
    else:
        vmem_limit = None
    return bf16_eup, vmem_limit, is_v7


# ----------------------------------------------------------------------------
# Pallas kernel: one grid step = (batch element, query tile).
# ----------------------------------------------------------------------------
def _co_attention_kernel(q_ref, r_ref, wt_ref, bt_ref, wphi_ref, bphi_ref,
                         wgup_ref, bgup_ref, bup_ref, out_ref, idx_ref,
                         phi_ref, gaux_ref, auxT_ref,
                         *, width, tq, p, c, exp_dtype, approx):
    """grid = (Btot, P // tq); axis 0 'parallel', axis 1 'arbitrary'.

    q_ref   : (1, tq, C) query tile                      (f32 or bf16)
    r_ref   : (1, P,  C) reference frame (resident across q tiles)
    wt/bt   : theta 1x1-conv weight (C,R) + bias (1,R)
    wphi/b  : phi   1x1-conv weight (C,R) + bias (1,R)
    wgup/b  : g-conv folded through the (BN-scaled) up conv: (C,C) + (1,C)
    bup     : up-conv bias with BN shift folded in (1,C), added post-softmax
    out_ref : (1, tq, C) f32 residual output
    idx_ref : (1, n_q, tq) f32 soft column index (lane-dense, resident over j)
    phi_ref : (P, R)   VMEM scratch, phi of the reference frame
    gaux_ref: (P, C+1) VMEM scratch, [g @ w_up_eff + b_gup | 1]
    auxT_ref: (2, P)   VMEM scratch, rows = [ref column index, 1]
    """
    cdt = wt_ref.dtype

    # Reference projections: computed once per batch element (first q tile),
    # kept resident in VMEM scratch for all query tiles.
    @pl.when(pl.program_id(1) == 0)
    def _():
        r = r_ref[0].astype(cdt)                                     # (P, C)
        phi = jnp.dot(r, wphi_ref[...],
                      preferred_element_type=jnp.float32) + bphi_ref[...]
        phi_ref[...] = phi.astype(cdt)
        gup = jnp.dot(r, wgup_ref[...],
                      preferred_element_type=jnp.float32) + bgup_ref[...]
        gaux_ref[:, :c] = gup.astype(cdt)                            # (P, C)
        gaux_ref[:, c:c + 1] = jnp.ones((p, 1), cdt)                 # denom col
        adt = auxT_ref.dtype
        col_row = (lax.broadcasted_iota(jnp.int32, (1, p), 1) % width)
        auxT_ref[0:1, :] = col_row.astype(adt)
        auxT_ref[1:2, :] = jnp.ones((1, p), adt)

    q = q_ref[0]                                                     # (tq, C)

    # theta projection (1x1 conv == channel matmul on MXU).
    theta = jnp.dot(q.astype(cdt), wt_ref[...],
                    preferred_element_type=jnp.float32) + bt_ref[...]  # (tq,R)

    # Scores over all reference positions + numerically stable exp.
    s = lax.dot_general(theta.astype(cdt), phi_ref[...],
                        (((1,), (1,)), ((), ())),
                        preferred_element_type=jnp.float32)            # (tq,P)
    m = jnp.max(s, axis=-1, keepdims=True)
    e = jnp.exp((s - m).astype(exp_dtype))                             # (tq,P)

    # One K=P pass gives both the (un-normalized, BN/up-folded) output and the
    # softmax denominator; normalization deferred to a (tq,1) reciprocal.
    res = jnp.dot(e.astype(cdt), gaux_ref[...],
                  preferred_element_type=jnp.float32)                  # (tq,C+1)
    inv_q = pl.reciprocal(res[:, c:c + 1], approx=approx)              # (tq,1)
    out_ref[0] = (q.astype(jnp.float32)
                  + res[:, :c] * inv_q + bup_ref[...]).astype(out_ref.dtype)

    # Soft index, produced with queries in LANES so the idx output stays
    # lane-dense: tiny transposed MXU pass (2,P) x (tq,P)^T -> (2,tq).
    adt = auxT_ref.dtype
    e_aux = e if e.dtype == adt else e.astype(adt)
    auxv = lax.dot_general(auxT_ref[...], e_aux,
                           (((1,), (1,)), ((), ())),
                           preferred_element_type=jnp.float32)          # (2,tq)
    inv_r = pl.reciprocal(auxv[1:2, :], approx=approx)                  # (1,tq)
    j = pl.program_id(1)
    own_col = ((j * tq + lax.broadcasted_iota(jnp.int32, (1, tq), 1))
               % width).astype(jnp.float32)
    idx_ref[0, pl.ds(j, 1), :] = own_col - auxv[0:1, :] * inv_r


def _pick_tq(p, target):
    """p itself if p <= target, else the largest multiple of 128 dividing p
    that is <= target (fallback: p).  Keeps every block's last dim either a
    multiple of 128 or the full array dim (lane-dense idx output)."""
    if p <= target:
        return p
    best = None
    d = 128
    while d <= target:
        if p % d == 0:
            best = d
        d += 128
    return best if best is not None else p


def _co_attention(q_flat, r_flat, params, width, *, tq=None,
                  compute_dtype=jnp.bfloat16, eps=1e-5):
    """Every row of q_flat attends over the matching row of r_flat.

    q_flat, r_flat: (Btot, P, C); position index = row_in_block * W + x.
    Returns (out (Btot,P,C) f32, soft_index (Btot,P) f32).
    """
    btot, p, c = q_flat.shape
    rep = params["w_theta"].shape[1]
    cdt = compute_dtype
    bf16_eup, vmem_limit, is_v7 = _device_profile()
    if tq is None:
        target = 128 if (is_v7 and p >= 2048) else 256
        tq = _pick_tq(p, target)
    assert p % tq == 0 and (tq == p or tq % 128 == 0), (p, tq)
    n_q = p // tq

    exp_dtype = jnp.bfloat16 if (cdt == jnp.bfloat16 and bf16_eup) \
        else jnp.float32
    # keep the column-index row exact where bf16 cannot represent it (W > 256)
    aux_dtype = jnp.float32 if (exp_dtype == jnp.bfloat16 and width > 256) \
        else exp_dtype

    # Fold inference-form BN into the up conv, then fold the g conv (and its
    # bias) through it -- attention is linear in g, so this is exact.
    scale = params["bn_gamma"] / jnp.sqrt(params["bn_var"] + eps)        # (1,C)
    w_up_eff = params["w_up"] * scale                                    # (R,C)
    b_up_eff = (params["b_up"] - params["bn_mean"]) * scale + params["bn_beta"]
    w_gup = jnp.dot(params["w_g"], w_up_eff).astype(cdt)                 # (C,C)
    b_gup = jnp.dot(params["b_g"], w_up_eff)                             # (1,C)
    w_t = params["w_theta"].astype(cdt)
    w_phi = params["w_phi"].astype(cdt)
    b_t = params["b_theta"]
    b_phi = params["b_phi"]

    kernel = functools.partial(_co_attention_kernel, width=width, tq=tq, p=p,
                               c=c, exp_dtype=exp_dtype,
                               approx=(cdt == jnp.bfloat16))

    in_bytes = jnp.dtype(q_flat.dtype).itemsize
    flops = 2 * btot * (2 * p * c * rep + p * c * c
                        + p * p * rep + p * p * (c + 3))
    bytes_accessed = (btot * p * c * (2 * in_bytes + 4) + btot * p * 4
                      + (2 * c * rep + c * c) * jnp.dtype(cdt).itemsize
                      + (2 * rep + 2 * c) * 4)
    cost = pl.CostEstimate(flops=int(flops),
                           transcendentals=int(btot * p * p),
                           bytes_accessed=int(bytes_accessed))

    def full(shape):
        return pl.BlockSpec(shape, lambda i, j: (0,) * len(shape))

    out, idx = pl.pallas_call(
        kernel,
        out_shape=(jax.ShapeDtypeStruct((btot, p, c), jnp.float32),
                   jax.ShapeDtypeStruct((btot, n_q, tq), jnp.float32)),
        grid=(btot, n_q),
        in_specs=[
            pl.BlockSpec((1, tq, c), lambda i, j: (i, j, 0)),   # query tile
            pl.BlockSpec((1, p, c), lambda i, j: (i, 0, 0)),    # ref (resident)
            full((c, rep)), full((1, rep)),                     # theta w, b
            full((c, rep)), full((1, rep)),                     # phi   w, b
            full((c, c)), full((1, c)),                         # g@up  w, b
            full((1, c)),                                       # up bias (+BN)
        ],
        out_specs=(pl.BlockSpec((1, tq, c), lambda i, j: (i, j, 0)),
                   pl.BlockSpec((1, n_q, tq), lambda i, j: (i, 0, 0))),
        scratch_shapes=[pltpu.VMEM((p, rep), cdt),        # phi(ref)
                        pltpu.VMEM((p, c + 1), cdt),      # [g@up | 1]
                        pltpu.VMEM((2, p), aux_dtype)],   # [[col],[1]]
        compiler_params=pltpu.CompilerParams(
            dimension_semantics=("parallel", "arbitrary"),
            vmem_limit_bytes=vmem_limit),
        cost_estimate=cost,
    )(q_flat, r_flat, w_t, b_t, w_phi, b_phi, w_gup, b_gup, b_up_eff)
    return out, idx.reshape(btot, p)


# ----------------------------------------------------------------------------
# co_non_local_block_0 forward (both directions fused into one pallas_call).
# ----------------------------------------------------------------------------
def co_non_local_block_0_forward(left, right, params, *, tq=None,
                                 compute_dtype=jnp.bfloat16):
    b, c, h, w = left.shape
    p = h * w
    in_dt = jnp.bfloat16 if compute_dtype == jnp.bfloat16 else jnp.float32
    lf = jnp.transpose(left, (0, 2, 3, 1)).reshape(b, p, c).astype(in_dt)
    rf = jnp.transpose(right, (0, 2, 3, 1)).reshape(b, p, c).astype(in_dt)
    q = jnp.concatenate([lf, rf], axis=0)   # direction-fused batch
    r = jnp.concatenate([rf, lf], axis=0)
    out, idx = _co_attention(q, r, params, w, tq=tq, compute_dtype=compute_dtype)
    l_n = jnp.transpose(out[:b].reshape(b, h, w, c), (0, 3, 1, 2))
    r_n = jnp.transpose(out[b:].reshape(b, h, w, c), (0, 3, 1, 2))
    index_l = idx[:b].reshape(b, h, w)
    index_r = idx[b:].reshape(b, h, w)
    return l_n, r_n, index_l, index_r


# ----------------------------------------------------------------------------
# sample_rows / aggregate_rows in NHWC (plain JAX data movement).
# ----------------------------------------------------------------------------
def _sample_rows_nhwc(x, row_size, stride):
    b, h, w, c = x.shape
    rem = (h - row_size) % stride
    if rem != 0:
        x = jnp.pad(x, ((0, 0), (0, rem), (0, 0), (0, 0)), mode="reflect")
    nb = (h + rem - row_size) // stride + 1
    rows = jnp.stack([x[:, i * stride:i * stride + row_size] for i in range(nb)],
                     axis=1)                      # (b, nb, row_size, w, c)
    return rows, rem


def _aggregate_rows_nhwc(x, target_h, remainder, row_size, stride):
    b, nb, rs, w, c = x.shape
    out = jnp.zeros((b, target_h + remainder, w, c), x.dtype)
    cnt = jnp.zeros((1, target_h + remainder, 1, 1), x.dtype)
    for i in range(nb):   # later blocks overwrite (matches torch), then /count
        out = out.at[:, i * stride:i * stride + rs].set(x[:, i])
        cnt = cnt.at[:, i * stride:i * stride + rs].add(1.0)
    return out[:, :target_h] / cnt[:, :target_h]


# ----------------------------------------------------------------------------
# row_attention_perlevel_0 forward.
# ----------------------------------------------------------------------------
def row_attention_perlevel_0_forward(left, right, params, *, row_size=3,
                                     stride=2, tq=None,
                                     compute_dtype=jnp.bfloat16):
    b, c, h, w = left.shape
    in_dt = jnp.bfloat16 if compute_dtype == jnp.bfloat16 else jnp.float32
    l_nhwc = jnp.transpose(left, (0, 2, 3, 1)).astype(in_dt)
    r_nhwc = jnp.transpose(right, (0, 2, 3, 1)).astype(in_dt)
    l_rows, rem = _sample_rows_nhwc(l_nhwc, row_size, stride)
    r_rows, _ = _sample_rows_nhwc(r_nhwc, row_size, stride)
    nb = l_rows.shape[1]
    p = row_size * w
    q = jnp.concatenate([l_rows, r_rows], axis=0).reshape(2 * b * nb, p, c)
    r = jnp.concatenate([r_rows, l_rows], axis=0).reshape(2 * b * nb, p, c)
    out, idx = _co_attention(q, r, params, w, tq=tq, compute_dtype=compute_dtype)
    out = out.reshape(2 * b, nb, row_size, w, c)
    idx = idx.reshape(2 * b, nb, row_size, w, 1)
    fl = _aggregate_rows_nhwc(out[:b], h, rem, row_size, stride)
    fr = _aggregate_rows_nhwc(out[b:], h, rem, row_size, stride)
    fil = _aggregate_rows_nhwc(idx[:b], h, rem, row_size, stride)
    fir = _aggregate_rows_nhwc(idx[b:], h, rem, row_size, stride)
    to_nchw = lambda x: jnp.transpose(x, (0, 3, 1, 2))
    return to_nchw(fl), to_nchw(fr), to_nchw(fil), to_nchw(fir)


# ----------------------------------------------------------------------------
# Deterministic parameter init (shapes from the module's __init__).
# Conv weights stored pre-transposed for the (B, P, C) layout:
#   theta/phi/g: (C, R);  up: (R, C).   BN gamma=beta=0 per the module init.
# ----------------------------------------------------------------------------
def init_params(key, in_channels, rep_channels):
    ks = jax.random.split(key, 8)

    def u(k, shape, fan_in):
        bound = 1.0 / jnp.sqrt(jnp.float32(fan_in))
        return jax.random.uniform(k, shape, jnp.float32, -bound, bound)

    C, R = in_channels, rep_channels
    return dict(
        w_theta=u(ks[0], (C, R), C), b_theta=u(ks[1], (1, R), C),
        w_phi=u(ks[2], (C, R), C),   b_phi=u(ks[3], (1, R), C),
        w_g=u(ks[4], (C, R), C),     b_g=u(ks[5], (1, R), C),
        w_up=u(ks[6], (R, C), R),    b_up=u(ks[7], (1, C), R),
        bn_gamma=jnp.zeros((1, C), jnp.float32),
        bn_beta=jnp.zeros((1, C), jnp.float32),
        bn_mean=jnp.zeros((1, C), jnp.float32),
        bn_var=jnp.ones((1, C), jnp.float32),
    )


# ----------------------------------------------------------------------------
# Pure-JAX reference (mirrors the torch math, NCHW, f32) for correctness.
# ----------------------------------------------------------------------------
def _sample_rows_nchw(x, row_size, stride):
    b, c, h, w = x.shape
    rem = (h - row_size) % stride
    if rem != 0:
        x = jnp.pad(x, ((0, 0), (0, 0), (0, rem), (0, 0)), mode="reflect")
    nb = (h + rem - row_size) // stride + 1
    rows = jnp.stack([x[:, :, i * stride:i * stride + row_size, :]
                      for i in range(nb)], axis=1)
    return rows, rem


def _aggregate_rows_nchw(x, target_h, remainder, row_size, stride):
    b, nb, c, rs, w = x.shape
    out = jnp.zeros((b, c, target_h + remainder, w), x.dtype)
    cnt = jnp.zeros((1, 1, target_h + remainder, 1), x.dtype)
    for i in range(nb):
        out = out.at[:, :, i * stride:i * stride + rs, :].set(x[:, i])
        cnt = cnt.at[:, :, i * stride:i * stride + rs, :].add(1.0)
    return out[:, :, :target_h, :] / cnt[:, :, :target_h, :]


def _reference_block(left, right, params, eps=1e-5):
    b, c, h, w = left.shape
    p = h * w

    def flat(x):
        return jnp.transpose(x, (0, 2, 3, 1)).reshape(b, p, c)

    def one_dir(qx, rx):
        qf, rf = flat(qx), flat(rx)
        theta = jnp.einsum("bpc,cr->bpr", qf, params["w_theta"]) + params["b_theta"]
        phi = jnp.einsum("bpc,cr->bpr", rf, params["w_phi"]) + params["b_phi"]
        g = jnp.einsum("bpc,cr->bpr", rf, params["w_g"]) + params["b_g"]
        s = jnp.einsum("bpr,bqr->bpq", theta, phi)
        a = jax.nn.softmax(s, axis=-1)
        col = (jnp.arange(p) % w).astype(jnp.float32)
        max_idx = jnp.sum(a * col[None, None, :], axis=-1)
        idx = col[None, :] - max_idx
        attn = jnp.einsum("bpq,bqr->bpr", a, g)
        up = jnp.einsum("bpr,rc->bpc", attn, params["w_up"]) + params["b_up"]
        bn = (up - params["bn_mean"]) / jnp.sqrt(params["bn_var"] + eps) \
             * params["bn_gamma"] + params["bn_beta"]
        out = qf + bn
        out = jnp.transpose(out.reshape(b, h, w, c), (0, 3, 1, 2))
        return out, idx.reshape(b, h, w)

    l_n, idx_l = one_dir(left, right)
    r_n, idx_r = one_dir(right, left)
    return l_n, r_n, idx_l, idx_r


def _reference_forward(left, right, params, row_size=3, stride=2):
    b, c, h, w = left.shape
    lrows, rem_l = _sample_rows_nchw(left, row_size, stride)
    rrows, rem_r = _sample_rows_nchw(right, row_size, stride)
    _, nb, _, _, _ = lrows.shape
    ol, orr, il, ir = _reference_block(lrows.reshape(-1, c, row_size, w),
                                       rrows.reshape(-1, c, row_size, w), params)
    ol = ol.reshape(b, nb, c, row_size, w)
    orr = orr.reshape(b, nb, c, row_size, w)
    il = il.reshape(b, nb, 1, row_size, w)
    ir = ir.reshape(b, nb, 1, row_size, w)
    return (_aggregate_rows_nchw(ol, h, rem_l, row_size, stride),
            _aggregate_rows_nchw(orr, h, rem_r, row_size, stride),
            _aggregate_rows_nchw(il, h, rem_l, row_size, stride),
            _aggregate_rows_nchw(ir, h, rem_r, row_size, stride))


if __name__ == "__main__":
    key = jax.random.PRNGKey(0)
    k_l, k_r, k_p, k_b, k_l3, k_r3 = jax.random.split(key, 6)

    B, C, H, W = 2, 16, 8, 16      # (H - row_size) % stride == 1 -> reflect pad
    R = C // 2                     # rep_channels default = in_channels // 2
    ROW, STRIDE = 3, 2             # module defaults

    left = jax.random.normal(k_l, (B, C, H, W), jnp.float32)
    right = jax.random.normal(k_r, (B, C, H, W), jnp.float32)
    params = init_params(k_p, C, R)

    # 1) f32 compute, module-init parameters (BN gamma=0 path).
    out1 = row_attention_perlevel_0_forward(left, right, params, row_size=ROW,
                                            stride=STRIDE,
                                            compute_dtype=jnp.float32)
    jax.block_until_ready(out1)
    ref1 = _reference_forward(left, right, params, row_size=ROW, stride=STRIDE)
    for a, b_, tol in zip(out1, ref1, (1e-4, 1e-4, 1e-3, 1e-3)):
        assert jnp.allclose(a, b_, atol=tol, rtol=tol), \
            float(jnp.max(jnp.abs(a - b_)))

    # 2) Non-trivial BN affine (exercises the folded g->up/BN path), f32.
    params_bn = dict(params)
    params_bn["bn_gamma"] = jnp.full((1, C), 0.5, jnp.float32)
    params_bn["bn_beta"] = 0.1 * jax.random.normal(k_b, (1, C), jnp.float32)
    out2 = row_attention_perlevel_0_forward(left, right, params_bn, row_size=ROW,
                                            stride=STRIDE,
                                            compute_dtype=jnp.float32)
    ref2 = _reference_forward(left, right, params_bn, row_size=ROW, stride=STRIDE)
    for a, b_, tol in zip(out2, ref2, (1e-4, 1e-4, 1e-3, 1e-3)):
        assert jnp.allclose(a, b_, atol=tol, rtol=tol), \
            float(jnp.max(jnp.abs(a - b_)))

    # 3) Multi-query-tile path (P = 384 -> tq = 128, 3 tiles), f32, BN affine.
    B3, H3, W3 = 1, 6, 128
    left3 = jax.random.normal(k_l3, (B3, C, H3, W3), jnp.float32)
    right3 = jax.random.normal(k_r3, (B3, C, H3, W3), jnp.float32)
    out3 = row_attention_perlevel_0_forward(left3, right3, params_bn,
                                            row_size=ROW, stride=STRIDE,
                                            compute_dtype=jnp.float32)
    jax.block_until_ready(out3)
    ref3 = _reference_forward(left3, right3, params_bn, row_size=ROW,
                              stride=STRIDE)
    for a, b_, tol in zip(out3, ref3, (1e-3, 1e-3, 5e-2, 5e-2)):
        assert jnp.allclose(a, b_, atol=tol, rtol=tol), \
            float(jnp.max(jnp.abs(a - b_)))

    # 4) bf16 MXU/IO path (default compute dtype), loose tolerances.
    out4 = row_attention_perlevel_0_forward(left, right, params_bn, row_size=ROW,
                                            stride=STRIDE)
    jax.block_until_ready(out4)
    for a, b_, tol in zip(out4, ref2, (1e-1, 1e-1, 1.0, 1.0)):
        assert jnp.allclose(a, b_, atol=tol, rtol=0.0), \
            float(jnp.max(jnp.abs(a - b_)))

    print("KERNEL_OK")
</pallas_src>

<mosaic_0001>
module attributes {stable_mosaic.version = 11 : i64} {
  func.func @_co_attention_kernel(%arg0: i32, %arg1: i32, %arg2: memref<1x48x16xf32, #tpu.memory_space<vmem>>, %arg3: memref<1x48x16xf32, #tpu.memory_space<vmem>>, %arg4: memref<16x8xf32, #tpu.memory_space<vmem>>, %arg5: memref<1x8xf32, #tpu.memory_space<vmem>>, %arg6: memref<16x8xf32, #tpu.memory_space<vmem>>, %arg7: memref<1x8xf32, #tpu.memory_space<vmem>>, %arg8: memref<16x16xf32, #tpu.memory_space<vmem>>, %arg9: memref<1x16xf32, #tpu.memory_space<vmem>>, %arg10: memref<1x16xf32, #tpu.memory_space<vmem>>, %arg11: memref<1x48x16xf32, #tpu.memory_space<vmem>>, %arg12: memref<1x1x48xf32, #tpu.memory_space<vmem>>, %arg13: memref<48x8xf32, #tpu.memory_space<vmem>>, %arg14: memref<48x17xf32, #tpu.memory_space<vmem>>, %arg15: memref<2x48xf32, #tpu.memory_space<vmem>>) attributes {dimension_semantics = [#tpu.dimension_semantics<parallel>, #tpu.dimension_semantics<arbitrary>], iteration_bounds = array<i64: 16, 1>, scalar_prefetch = 0 : i64, scratch_operands = 3 : i64, tpu.core_type = #tpu.core_type<tc>, window_params = [{transform_indices = @transform_0, window_bounds = array<i64: 1, 48, 16>}, {transform_indices = @transform_1, window_bounds = array<i64: 1, 48, 16>}, {pipeline_mode = #tpu.pipeline_mode<synchronous>, transform_indices = @transform_2, window_bounds = array<i64: 16, 8>}, {pipeline_mode = #tpu.pipeline_mode<synchronous>, transform_indices = @transform_3, window_bounds = array<i64: 1, 8>}, {pipeline_mode = #tpu.pipeline_mode<synchronous>, transform_indices = @transform_4, window_bounds = array<i64: 16, 8>}, {pipeline_mode = #tpu.pipeline_mode<synchronous>, transform_indices = @transform_5, window_bounds = array<i64: 1, 8>}, {pipeline_mode = #tpu.pipeline_mode<synchronous>, transform_indices = @transform_6, window_bounds = array<i64: 16, 16>}, {pipeline_mode = #tpu.pipeline_mode<synchronous>, transform_indices = @transform_7, window_bounds = array<i64: 1, 16>}, {pipeline_mode = #tpu.pipeline_mode<synchronous>, transform_indices = @transform_8, window_bounds = array<i64: 1, 16>}, {transform_indices = @transform_9, window_bounds = array<i64: 1, 48, 16>}, {transform_indices = @transform_10, window_bounds = array<i64: 1, 1, 48>}]} {
    %c0_i32 = arith.constant 0 : i32
    %0 = arith.cmpi eq, %arg1, %c0_i32 : i32
    %1 = arith.extui %0 : i1 to i32
    %c0_i32_0 = arith.constant 0 : i32
    %2 = arith.cmpi ne, %1, %c0_i32_0 : i32
    scf.if %2 {
      %c0_28 = arith.constant 0 : index
      %c0_29 = arith.constant 0 : index
      %c0_30 = arith.constant 0 : index
      %63 = vector.load %arg3[%c0_28, %c0_29, %c0_30] : memref<1x48x16xf32, #tpu.memory_space<vmem>>, vector<1x48x16xf32>
      %64 = vector.shape_cast %63 : vector<1x48x16xf32> to vector<48x16xf32>
      %c0_31 = arith.constant 0 : index
      %c0_32 = arith.constant 0 : index
      %65 = vector.load %arg6[%c0_31, %c0_32] : memref<16x8xf32, #tpu.memory_space<vmem>>, vector<16x8xf32>
      %cst_33 = arith.constant dense<0.000000e+00> : vector<48x8xf32>
      %66 = tpu.matmul %64, %65, %cst_33 {dimension_numbers = #tpu.dot_dimension_numbers<[1], [0], [0], [1], [0, 0, 1, 1], [], []>} : vector<48x16xf32>, vector<16x8xf32>, vector<48x8xf32> -> vector<48x8xf32>
      %c0_34 = arith.constant 0 : index
      %c0_35 = arith.constant 0 : index
      %67 = vector.load %arg7[%c0_34, %c0_35] : memref<1x8xf32, #tpu.memory_space<vmem>>, vector<1x8xf32>
      %68 = vector.broadcast %67 : vector<1x8xf32> to vector<48x8xf32>
      %69 = arith.addf %66, %68 : vector<48x8xf32>
      %c0_36 = arith.constant 0 : index
      %c0_37 = arith.constant 0 : index
      %70 = vector.load %arg13[%c0_36, %c0_37] : memref<48x8xf32, #tpu.memory_space<vmem>>, vector<48x8xf32>
      tpu.vector_store %arg13[%c0_36, %c0_37], %69 {strides = array<i32>} : memref<48x8xf32, #tpu.memory_space<vmem>>, vector<48x8xf32>,
      %c0_38 = arith.constant 0 : index
      %c0_39 = arith.constant 0 : index
      %71 = vector.load %arg8[%c0_38, %c0_39] : memref<16x16xf32, #tpu.memory_space<vmem>>, vector<16x16xf32>
      %cst_40 = arith.constant dense<0.000000e+00> : vector<48x16xf32>
      %72 = tpu.matmul %64, %71, %cst_40 {dimension_numbers = #tpu.dot_dimension_numbers<[1], [0], [0], [1], [0, 0, 1, 1], [], []>} : vector<48x16xf32>, vector<16x16xf32>, vector<48x16xf32> -> vector<48x16xf32>
      %c0_41 = arith.constant 0 : index
      %c0_42 = arith.constant 0 : index
      %73 = vector.load %arg9[%c0_41, %c0_42] : memref<1x16xf32, #tpu.memory_space<vmem>>, vector<1x16xf32>
      %74 = vector.broadcast %73 : vector<1x16xf32> to vector<48x16xf32>
      %75 = arith.addf %72, %74 : vector<48x16xf32>
      %c0_43 = arith.constant 0 : index
      %c0_44 = arith.constant 0 : index
      %76 = vector.load %arg14[%c0_43, %c0_44] : memref<48x17xf32, #tpu.memory_space<vmem>>, vector<48x16xf32>
      tpu.vector_store %arg14[%c0_43, %c0_44], %75 {strides = array<i32>} : memref<48x17xf32, #tpu.memory_space<vmem>>, vector<48x16xf32>,
      %cst_45 = arith.constant 1.000000e+00 : f32
      %77 = vector.broadcast %cst_45 : f32 to vector<48x1xf32>
      %c0_46 = arith.constant 0 : index
      %c16 = arith.constant 16 : index
      %78 = vector.load %arg14[%c0_46, %c16] : memref<48x17xf32, #tpu.memory_space<vmem>>, vector<48x1xf32>
      tpu.vector_store %arg14[%c0_46, %c16], %77 {strides = array<i32>} : memref<48x17xf32, #tpu.memory_space<vmem>>, vector<48x1xf32>,
      %79 = tpu.iota {dimensions = array<i32: 1>} : vector<1x48xi32>
      %c16_i32_47 = arith.constant 16 : i32
      %c0_i32_48 = arith.constant 0 : i32
      %80 = arith.cmpi eq, %c16_i32_47, %c0_i32_48 : i32
      %c1_i32_49 = arith.constant 1 : i32
      %81 = arith.select %80, %c1_i32_49, %c16_i32_47 : i32
      %82 = vector.broadcast %81 : i32 to vector<1x48xi32>
      %83 = arith.remsi %79, %82 : vector<1x48xi32>
      %c0_i32_50 = arith.constant 0 : i32
      %84 = vector.broadcast %c0_i32_50 : i32 to vector<1x48xi32>
      %85 = arith.cmpi ne, %83, %84 : vector<1x48xi32>
      %c0_i32_51 = arith.constant 0 : i32
      %86 = vector.broadcast %c0_i32_51 : i32 to vector<1x48xi32>
      %87 = arith.cmpi slt, %83, %86 : vector<1x48xi32>
      %c0_i32_52 = arith.constant 0 : i32
      %88 = arith.cmpi slt, %81, %c0_i32_52 : i32
      %89 = vector.broadcast %88 : i1 to vector<1x48xi1>
      %90 = vector.broadcast %89 : vector<1x48xi1> to vector<1x48xi1>
      %91 = arith.xori %87, %90 : vector<1x48xi1>
      %92 = arith.andi %91, %85 : vector<1x48xi1>
      %93 = vector.broadcast %81 : i32 to vector<1x48xi32>
      %94 = arith.addi %83, %93 : vector<1x48xi32>
      %95 = arith.select %92, %94, %83 : vector<1x48xi1>, vector<1x48xi32>
      %96 = arith.sitofp %95 : vector<1x48xi32> to vector<1x48xf32>
      %c0_53 = arith.constant 0 : index
      %c0_54 = arith.constant 0 : index
      %97 = vector.load %arg15[%c0_53, %c0_54] : memref<2x48xf32, #tpu.memory_space<vmem>>, vector<1x48xf32>
      tpu.vector_store %arg15[%c0_53, %c0_54], %96 {strides = array<i32>} : memref<2x48xf32, #tpu.memory_space<vmem>>, vector<1x48xf32>,
      %cst_55 = arith.constant 1.000000e+00 : f32
      %98 = vector.broadcast %cst_55 : f32 to vector<1x48xf32>
      %c1 = arith.constant 1 : index
      %c0_56 = arith.constant 0 : index
      %99 = vector.load %arg15[%c1, %c0_56] : memref<2x48xf32, #tpu.memory_space<vmem>>, vector<1x48xf32>
      tpu.vector_store %arg15[%c1, %c0_56], %98 {strides = array<i32>} : memref<2x48xf32, #tpu.memory_space<vmem>>, vector<1x48xf32>,
    } else {
    }
    %c0 = arith.constant 0 : index
    %c0_1 = arith.constant 0 : index
    %c0_2 = arith.constant 0 : index
    %3 = vector.load %arg2[%c0, %c0_1, %c0_2] : memref<1x48x16xf32, #tpu.memory_space<vmem>>, vector<1x48x16xf32>
    %4 = vector.shape_cast %3 : vector<1x48x16xf32> to vector<48x16xf32>
    %c0_3 = arith.constant 0 : index
    %c0_4 = arith.constant 0 : index
    %5 = vector.load %arg4[%c0_3, %c0_4] : memref<16x8xf32, #tpu.memory_space<vmem>>, vector<16x8xf32>
    %cst = arith.constant dense<0.000000e+00> : vector<48x8xf32>
    %6 = tpu.matmul %4, %5, %cst {dimension_numbers = #tpu.dot_dimension_numbers<[1], [0], [0], [1], [0, 0, 1, 1], [], []>} : vector<48x16xf32>, vector<16x8xf32>, vector<48x8xf32> -> vector<48x8xf32>
    %c0_5 = arith.constant 0 : index
    %c0_6 = arith.constant 0 : index
    %7 = vector.load %arg5[%c0_5, %c0_6] : memref<1x8xf32, #tpu.memory_space<vmem>>, vector<1x8xf32>
    %8 = vector.broadcast %7 : vector<1x8xf32> to vector<48x8xf32>
    %9 = arith.addf %6, %8 : vector<48x8xf32>
    %c0_7 = arith.constant 0 : index
    %c0_8 = arith.constant 0 : index
    %10 = vector.load %arg13[%c0_7, %c0_8] : memref<48x8xf32, #tpu.memory_space<vmem>>, vector<48x8xf32>
    %cst_9 = arith.constant dense<0.000000e+00> : vector<48x48xf32>
    %11 = tpu.matmul %9, %10, %cst_9 {dimension_numbers = #tpu.dot_dimension_numbers<[1], [1], [0], [0], [0, 0, 1, 0], [], []>} : vector<48x8xf32>, vector<48x8xf32>, vector<48x48xf32> -> vector<48x48xf32>
    %cst_10 = arith.constant dense<0xFF800000> : vector<48xf32>
    %12 = vector.multi_reduction <maximumf>, %11, %cst_10 [1] : vector<48x48xf32> to vector<48xf32>
    %13 = vector.shape_cast %12 : vector<48xf32> to vector<48x1xf32>
    %14 = vector.broadcast %13 : vector<48x1xf32> to vector<48x48xf32>
    %15 = arith.subf %11, %14 : vector<48x48xf32>
    %16 = math.exp %15 : vector<48x48xf32>
    %c0_11 = arith.constant 0 : index
    %c0_12 = arith.constant 0 : index
    %17 = vector.load %arg14[%c0_11, %c0_12] : memref<48x17xf32, #tpu.memory_space<vmem>>, vector<48x17xf32>
    %cst_13 = arith.constant dense<0.000000e+00> : vector<48x17xf32>
    %18 = tpu.matmul %16, %17, %cst_13 {dimension_numbers = #tpu.dot_dimension_numbers<[1], [0], [0], [1], [0, 0, 1, 1], [], []>} : vector<48x48xf32>, vector<48x17xf32>, vector<48x17xf32> -> vector<48x17xf32>
    %19 = vector.extract_strided_slice %18 {offsets = [0, 16], sizes = [48, 1], strides = [1, 1]} : vector<48x17xf32> to vector<48x1xf32>
    %20 = tpu.reciprocal %19 : vector<48x1xf32> -> vector<48x1xf32>
    %21 = vector.extract_strided_slice %18 {offsets = [0, 0], sizes = [48, 16], strides = [1, 1]} : vector<48x17xf32> to vector<48x16xf32>
    %22 = vector.broadcast %20 : vector<48x1xf32> to vector<48x16xf32>
    %23 = arith.mulf %21, %22 : vector<48x16xf32>
    %24 = arith.addf %4, %23 : vector<48x16xf32>
    %c0_14 = arith.constant 0 : index
    %c0_15 = arith.constant 0 : index
    %25 = vector.load %arg10[%c0_14, %c0_15] : memref<1x16xf32, #tpu.memory_space<vmem>>, vector<1x16xf32>
    %26 = vector.broadcast %25 : vector<1x16xf32> to vector<48x16xf32>
    %27 = arith.addf %24, %26 : vector<48x16xf32>
    %c0_16 = arith.constant 0 : index
    %c0_17 = arith.constant 0 : index
    %c0_18 = arith.constant 0 : index
    %28 = vector.load %arg11[%c0_16, %c0_17, %c0_18] : memref<1x48x16xf32, #tpu.memory_space<vmem>>, vector<1x48x16xf32>
    %29 = vector.shape_cast %28 : vector<1x48x16xf32> to vector<48x16xf32>
    %30 = vector.shape_cast %27 : vector<48x16xf32> to vector<1x48x16xf32>
    tpu.vector_store %arg11[%c0_16, %c0_17, %c0_18], %30 {strides = array<i32>} : memref<1x48x16xf32, #tpu.memory_space<vmem>>, vector<1x48x16xf32>,
    %c0_19 = arith.constant 0 : index
    %c0_20 = arith.constant 0 : index
    %31 = vector.load %arg15[%c0_19, %c0_20] : memref<2x48xf32, #tpu.memory_space<vmem>>, vector<2x48xf32>
    %cst_21 = arith.constant dense<0.000000e+00> : vector<2x48xf32>
    %32 = tpu.matmul %31, %16, %cst_21 {dimension_numbers = #tpu.dot_dimension_numbers<[1], [1], [0], [0], [0, 0, 1, 0], [], []>} : vector<2x48xf32>, vector<48x48xf32>, vector<2x48xf32> -> vector<2x48xf32>
    %33 = vector.extract_strided_slice %32 {offsets = [1, 0], sizes = [1, 48], strides = [1, 1]} : vector<2x48xf32> to vector<1x48xf32>
    %34 = tpu.reciprocal %33 : vector<1x48xf32> -> vector<1x48xf32>
    %c48_i32 = arith.constant 48 : i32
    %35 = arith.muli %arg1, %c48_i32 : i32
    %36 = tpu.iota {dimensions = array<i32: 1>} : vector<1x48xi32>
    %37 = vector.broadcast %35 : i32 to vector<1x48xi32>
    %38 = arith.addi %37, %36 : vector<1x48xi32>
    %c16_i32 = arith.constant 16 : i32
    %c0_i32_22 = arith.constant 0 : i32
    %39 = arith.cmpi eq, %c16_i32, %c0_i32_22 : i32
    %c1_i32 = arith.constant 1 : i32
    %40 = arith.select %39, %c1_i32, %c16_i32 : i32
    %41 = vector.broadcast %40 : i32 to vector<1x48xi32>
    %42 = arith.remsi %38, %41 : vector<1x48xi32>
    %c0_i32_23 = arith.constant 0 : i32
    %43 = vector.broadcast %c0_i32_23 : i32 to vector<1x48xi32>
    %44 = arith.cmpi ne, %42, %43 : vector<1x48xi32>
    %c0_i32_24 = arith.constant 0 : i32
    %45 = vector.broadcast %c0_i32_24 : i32 to vector<1x48xi32>
    %46 = arith.cmpi slt, %42, %45 : vector<1x48xi32>
    %c0_i32_25 = arith.constant 0 : i32
    %47 = arith.cmpi slt, %40, %c0_i32_25 : i32
    %48 = vector.broadcast %47 : i1 to vector<1x48xi1>
    %49 = vector.broadcast %48 : vector<1x48xi1> to vector<1x48xi1>
    %50 = arith.xori %46, %49 : vector<1x48xi1>
    %51 = arith.andi %50, %44 : vector<1x48xi1>
    %52 = vector.broadcast %40 : i32 to vector<1x48xi32>
    %53 = arith.addi %42, %52 : vector<1x48xi32>
    %54 = arith.select %51, %53, %42 : vector<1x48xi1>, vector<1x48xi32>
    %55 = arith.sitofp %54 : vector<1x48xi32> to vector<1x48xf32>
    %56 = vector.extract_strided_slice %32 {offsets = [0, 0], sizes = [1, 48], strides = [1, 1]} : vector<2x48xf32> to vector<1x48xf32>
    %57 = arith.mulf %56, %34 : vector<1x48xf32>
    %58 = arith.subf %55, %57 : vector<1x48xf32>
    %c0_26 = arith.constant 0 : index
    %59 = arith.index_cast %arg1 : i32 to index
    %c0_27 = arith.constant 0 : index
    %60 = vector.load %arg12[%c0_26, %59, %c0_27] : memref<1x1x48xf32, #tpu.memory_space<vmem>>, vector<1x1x48xf32>
    %61 = vector.shape_cast %60 : vector<1x1x48xf32> to vector<1x48xf32>
    %62 = vector.shape_cast %58 : vector<1x48xf32> to vector<1x1x48xf32>
    tpu.vector_store %arg12[%c0_26, %59, %c0_27], %62 {strides = array<i32>} : memref<1x1x48xf32, #tpu.memory_space<vmem>>, vector<1x1x48xf32>,
    return
  }
  func.func @transform_0(%arg0: i32, %arg1: i32) -> (i32, i32, i32) {
    %c0_i32 = arith.constant 0 : i32
    %c0_i32_0 = arith.constant 0 : i32
    return %arg0, %arg1, %c0_i32 : i32, i32, i32
  }
  func.func @transform_1(%arg0: i32, %arg1: i32) -> (i32, i32, i32) {
    %c0_i32 = arith.constant 0 : i32
    %c0_i32_0 = arith.constant 0 : i32
    %c0_i32_1 = arith.constant 0 : i32
    return %arg0, %c0_i32, %c0_i32_0 : i32, i32, i32
  }
  func.func @transform_2(%arg0: i32, %arg1: i32) -> (i32, i32) {
    %c0_i32 = arith.constant 0 : i32
    %c0_i32_0 = arith.constant 0 : i32
    %c0_i32_1 = arith.constant 0 : i32
    return %c0_i32, %c0_i32_0 : i32, i32
  }
  func.func @transform_3(%arg0: i32, %arg1: i32) -> (i32, i32) {
    %c0_i32 = arith.constant 0 : i32
    %c0_i32_0 = arith.constant 0 : i32
    %c0_i32_1 = arith.constant 0 : i32
    return %c0_i32, %c0_i32_0 : i32, i32
  }
  func.func @transform_4(%arg0: i32, %arg1: i32) -> (i32, i32) {
    %c0_i32 = arith.constant 0 : i32
    %c0_i32_0 = arith.constant 0 : i32
    %c0_i32_1 = arith.constant 0 : i32
    return %c0_i32, %c0_i32_0 : i32, i32
  }
  func.func @transform_5(%arg0: i32, %arg1: i32) -> (i32, i32) {
    %c0_i32 = arith.constant 0 : i32
    %c0_i32_0 = arith.constant 0 : i32
    %c0_i32_1 = arith.constant 0 : i32
    return %c0_i32, %c0_i32_0 : i32, i32
  }
  func.func @transform_6(%arg0: i32, %arg1: i32) -> (i32, i32) {
    %c0_i32 = arith.constant 0 : i32
    %c0_i32_0 = arith.constant 0 : i32
    %c0_i32_1 = arith.constant 0 : i32
    return %c0_i32, %c0_i32_0 : i32, i32
  }
  func.func @transform_7(%arg0: i32, %arg1: i32) -> (i32, i32) {
    %c0_i32 = arith.constant 0 : i32
    %c0_i32_0 = arith.constant 0 : i32
    %c0_i32_1 = arith.constant 0 : i32
    return %c0_i32, %c0_i32_0 : i32, i32
  }
  func.func @transform_8(%arg0: i32, %arg1: i32) -> (i32, i32) {
    %c0_i32 = arith.constant 0 : i32
    %c0_i32_0 = arith.constant 0 : i32
    %c0_i32_1 = arith.constant 0 : i32
    return %c0_i32, %c0_i32_0 : i32, i32
  }
  func.func @transform_9(%arg0: i32, %arg1: i32) -> (i32, i32, i32) {
    %c0_i32 = arith.constant 0 : i32
    %c0_i32_0 = arith.constant 0 : i32
    return %arg0, %arg1, %c0_i32 : i32, i32, i32
  }
  func.func @transform_10(%arg0: i32, %arg1: i32) -> (i32, i32, i32) {
    %c0_i32 = arith.constant 0 : i32
    %c0_i32_0 = arith.constant 0 : i32
    %c0_i32_1 = arith.constant 0 : i32
    return %arg0, %c0_i32, %c0_i32_0 : i32, i32, i32
  }
}

</mosaic_0001>

<llo_original>
// kernel: tpu_custom_call.1
$region0: #{tpu_custom_call.1}
  #allocation0 [shape = 'u32[]', space=smem, size = 0x4, offset = 0x4, fixed_abs, tag = 'smem constant byte address 0x4 - core index']
  #allocation1 [shape = 'u32[144,128]{1,0:T(1,128)}', space=vmem, size = 0x12000, scoped, tag = 'internal scratch']
  #allocation2 [shape = 'f32[48,8]{1,0:T(8,128)}', space=vmem, size = 0x6000, scoped, tag = 'scratch operand']
  #allocation3 [shape = 'f32[48,17]{1,0:T(8,128)}', space=vmem, size = 0x6000, scoped, tag = 'scratch operand']
  #allocation4 [shape = 'f32[2,48]{1,0:T(2,128)}', space=vmem, size = 0x400, scoped, tag = 'scratch operand']
  %s0 = inlined_call_operand.vmem [shape: f32[16,48,16], index: 0, kind: input, shape index: {}]
  %s1 = inlined_call_operand.vmem [shape: f32[16,48,16], index: 1, kind: input, shape index: {}]
  %s2 = inlined_call_operand.vmem [shape: f32[16,8], index: 2, kind: input, shape index: {}]
  %s3 = inlined_call_operand.vmem [shape: f32[1,8], index: 3, kind: input, shape index: {}]
  %s4 = inlined_call_operand.vmem [shape: f32[16,8], index: 4, kind: input, shape index: {}]
  %s5 = inlined_call_operand.vmem [shape: f32[1,8], index: 5, kind: input, shape index: {}]
  %s6 = inlined_call_operand.vmem [shape: f32[16,16], index: 6, kind: input, shape index: {}]
  %s7 = inlined_call_operand.vmem [shape: f32[1,16], index: 7, kind: input, shape index: {}]
  %s8 = inlined_call_operand.vmem [shape: f32[1,16], index: 8, kind: input, shape index: {}]
  %s9 = inlined_call_operand.vmem [shape: f32[16,48,16], index: 9, kind: output, shape index: {0}]
  %s10 = inlined_call_operand.hbm [shape: f32[16,1,48], index: 10, kind: output, shape index: {1}]
  %11 = xla_tuple %s9, %s10
  %s12 = sld [smem:[#allocation0]]
  $region81: #{tpu_custom_call.1} parent=0
    _
  %s14 = ssub.s32 1, %s12
  %s15 = scalar_select 0, %s14, %s12
  $region1: #{tpu_custom_call.1} parent=0
    #allocation5 [shape = 'u8[1024]{0}', space=vmem, size = 0x400, scoped, tag = 'output window, operand 1']
    #allocation6 [shape = 's32[2]{0}', space=sflag, size = 0x8, scoped, tag = 'scoped memory for tpu_custom_call.1']
    %16 = vsyncpa [#allocation6], 0
    %s17 = scalar_lea.sflag [#allocation6], 1
    %18 = vsyncpa %s17, 0
    loop: start=0, step=1, limit=18
    $region2: #{tpu_custom_call.1} parent=1 // loop_pre_header
      _
    $region3: #{tpu_custom_call.1} parent=1 // loop_header
      %s20 = sphi 0, %s24
      %p21 = scmp.ge.s32.totalorder %s20, 18
      %s27 = sphi 0, %s39
      %s28 = sphi 0, %s35
      %s29 = sphi 0, %s27
      %s30 = sphi 0, %s28
      %s31 = sphi 0, %s29
      %s32 = sphi 0, %s30
      %s44 = sphi 0, %s46
      %s47 = sphi 0, %s44
      %s48 = sphi 0, %s47
      %s64 = sphi 0, %s48
      %s70 = sphi 0, %s72
      %s73 = sphi 0, %s70
      %s74 = sphi 0, %s73
      %s90 = sphi 0, %s74
      %s94 = sphi 0, %s94
      %s96 = sphi 0, %s94
      %s97 = sphi 0, %s96
      %s111 = sphi 0, %s97
      %s115 = sphi 0, %s115
      %s117 = sphi 0, %s115
      %s118 = sphi 0, %s117
      %s132 = sphi 0, %s118
      %s136 = sphi 0, %s136
      %s138 = sphi 0, %s136
      %s139 = sphi 0, %s138
      %s153 = sphi 0, %s139
      %s157 = sphi 0, %s157
      %s159 = sphi 0, %s157
      %s160 = sphi 0, %s159
      %s174 = sphi 0, %s160
      %s178 = sphi 0, %s178
      %s180 = sphi 0, %s178
      %s181 = sphi 0, %s180
      %s195 = sphi 0, %s181
      %s199 = sphi 0, %s199
      %s201 = sphi 0, %s199
      %s202 = sphi 0, %s201
      %s216 = sphi 0, %s202
      %s220 = sphi 0, %s220
      %s222 = sphi 0, %s220
      %s223 = sphi 0, %s222
      %s237 = sphi 0, %s223
      %s245 = sphi 0, %s247
      %s248 = sphi 0, %s245
      %s249 = sphi 0, %s248
      %s265 = sphi 0, %s249
      %s271 = sphi 0, %s273
      %s274 = sphi 0, %s271
      %s275 = sphi 0, %s274
      %s291 = sphi 0, %s275
    $region4: #{tpu_custom_call.1} parent=1 // loop_header_branch
      %23 = sbr.rel (%p21) target = $region8
    $region5: #{tpu_custom_call.1} parent=1 // loop_body
      %s25 = ssub.s32 %s20, 1
      %s26 = ssub.s32 %s20, 2
      %s33 = sadd.s32 1, %s28
      %p34 = scmp.ge.s32.totalorder %s33, 1
      %s35 = scalar_select %p34, 0, %s33
      %s36 = sadd.s32 1, %s27
      %s37 = scalar_select %p34, %s36, %s27
      %p38 = scmp.ge.s32.totalorder %s37, 16
      %s39 = scalar_select %p38, 0, %s37
      %s40 = ssub.s32 %s27, %s39
      %s41 = ssub.s32 %s28, %s35
      %s42 = sor.u32 %s40, %s41
      %p43 = scmp.eq.s32.totalorder %s42, 0
      %s45 = sadd.s32 %s44, 1
      %s46 = scalar_select %p43, %s44, %s45
      %p49 = pneg %p43
      %p50 = scmp.eq.s32.totalorder %s20, 15
      %p51 = por %p49, %p50
      %p52 = scmp.ne.s32.totalorder %s44, %s47
      %p53 = scmp.eq.s32.totalorder %s20, 0
      %p54 = por %p52, %p53
      %p55 = scmp.ne.s32.totalorder %s44, %s47
      %p56 = scmp.eq.s32.totalorder %s25, 15
      %p57 = por %p55, %p56
      %p58 = scmp.ne.s32.totalorder %s47, %s48
      %p59 = scmp.eq.s32.totalorder %s25, 0
      %p60 = por %p58, %p59
      %p61 = scmp.ne.s32.totalorder %s47, %s48
      %p62 = scmp.eq.s32.totalorder %s26, 15
      %p63 = por %p61, %p62
      %p65 = scmp.ne.s32.totalorder %s48, %s64
      %p66 = scmp.eq.s32.totalorder %s26, 0
      %p67 = por %p65, %p66
      %s68 = ssub.s32 %s27, %s39
      %p69 = scmp.eq.s32.totalorder %s68, 0
      %s71 = sadd.s32 %s70, 1
      %s72 = scalar_select %p69, %s70, %s71
      %p75 = pneg %p69
      %p76 = scmp.eq.s32.totalorder %s20, 15
      %p77 = por %p75, %p76
      %p78 = scmp.ne.s32.totalorder %s70, %s73
      %p79 = scmp.eq.s32.totalorder %s20, 0
      %p80 = por %p78, %p79
      %p81 = scmp.ne.s32.totalorder %s70, %s73
      %p82 = scmp.eq.s32.totalorder %s25, 15
      %p83 = por %p81, %p82
      %p84 = scmp.ne.s32.totalorder %s73, %s74
      %p85 = scmp.eq.s32.totalorder %s25, 0
      %p86 = por %p84, %p85
      %p87 = scmp.ne.s32.totalorder %s73, %s74
      %p88 = scmp.eq.s32.totalorder %s26, 15
      %p89 = por %p87, %p88
      %p91 = scmp.ne.s32.totalorder %s74, %s90
      %p92 = scmp.eq.s32.totalorder %s26, 0
      %p93 = por %p91, %p92
      %s95 = sadd.s32 %s94, 1
      %p98 = scmp.eq.s32.totalorder %s20, 15
      %p99 = scmp.ne.s32.totalorder %s94, %s96
      %p100 = scmp.eq.s32.totalorder %s20, 0
      %p101 = por %p99, %p100
      %p102 = scmp.ne.s32.totalorder %s94, %s96
      %p103 = scmp.eq.s32.totalorder %s25, 15
      %p104 = por %p102, %p103
      %p105 = scmp.ne.s32.totalorder %s96, %s97
      %p106 = scmp.eq.s32.totalorder %s25, 0
      %p107 = por %p105, %p106
      %p108 = scmp.ne.s32.totalorder %s96, %s97
      %p109 = scmp.eq.s32.totalorder %s26, 15
      %p110 = por %p108, %p109
      %p112 = scmp.ne.s32.totalorder %s97, %s111
      %p113 = scmp.eq.s32.totalorder %s26, 0
      %p114 = por %p112, %p113
      %s116 = sadd.s32 %s115, 1
      %p119 = scmp.eq.s32.totalorder %s20, 15
      %p120 = scmp.ne.s32.totalorder %s115, %s117
      %p121 = scmp.eq.s32.totalorder %s20, 0
      %p122 = por %p120, %p121
      %p123 = scmp.ne.s32.totalorder %s115, %s117
      %p124 = scmp.eq.s32.totalorder %s25, 15
      %p125 = por %p123, %p124
      %p126 = scmp.ne.s32.totalorder %s117, %s118
      %p127 = scmp.eq.s32.totalorder %s25, 0
      %p128 = por %p126, %p127
      %p129 = scmp.ne.s32.totalorder %s117, %s118
      %p130 = scmp.eq.s32.totalorder %s26, 15
      %p131 = por %p129, %p130
      %p133 = scmp.ne.s32.totalorder %s118, %s132
      %p134 = scmp.eq.s32.totalorder %s26, 0
      %p135 = por %p133, %p134
      %s137 = sadd.s32 %s136, 1
      %p140 = scmp.eq.s32.totalorder %s20, 15
      %p141 = scmp.ne.s32.totalorder %s136, %s138
      %p142 = scmp.eq.s32.totalorder %s20, 0
      %p143 = por %p141, %p142
      %p144 = scmp.ne.s32.totalorder %s136, %s138
      %p145 = scmp.eq.s32.totalorder %s25, 15
      %p146 = por %p144, %p145
      %p147 = scmp.ne.s32.totalorder %s138, %s139
      %p148 = scmp.eq.s32.totalorder %s25, 0
      %p149 = por %p147, %p148
      %p150 = scmp.ne.s32.totalorder %s138, %s139
      %p151 = scmp.eq.s32.totalorder %s26, 15
      %p152 = por %p150, %p151
      %p154 = scmp.ne.s32.totalorder %s139, %s153
      %p155 = scmp.eq.s32.totalorder %s26, 0
      %p156 = por %p154, %p155
      %s158 = sadd.s32 %s157, 1
      %p161 = scmp.eq.s32.totalorder %s20, 15
      %p162 = scmp.ne.s32.totalorder %s157, %s159
      %p163 = scmp.eq.s32.totalorder %s20, 0
      %p164 = por %p162, %p163
      %p165 = scmp.ne.s32.totalorder %s157, %s159
      %p166 = scmp.eq.s32.totalorder %s25, 15
      %p167 = por %p165, %p166
      %p168 = scmp.ne.s32.totalorder %s159, %s160
      %p169 = scmp.eq.s32.totalorder %s25, 0
      %p170 = por %p168, %p169
      %p171 = scmp.ne.s32.totalorder %s159, %s160
      %p172 = scmp.eq.s32.totalorder %s26, 15
      %p173 = por %p171, %p172
      %p175 = scmp.ne.s32.totalorder %s160, %s174
      %p176 = scmp.eq.s32.totalorder %s26, 0
      %p177 = por %p175, %p176
      %s179 = sadd.s32 %s178, 1
      %p182 = scmp.eq.s32.totalorder %s20, 15
      %p183 = scmp.ne.s32.totalorder %s178, %s180
      %p184 = scmp.eq.s32.totalorder %s20, 0
      %p185 = por %p183, %p184
      %p186 = scmp.ne.s32.totalorder %s178, %s180
      %p187 = scmp.eq.s32.totalorder %s25, 15
      %p188 = por %p186, %p187
      %p189 = scmp.ne.s32.totalorder %s180, %s181
      %p190 = scmp.eq.s32.totalorder %s25, 0
      %p191 = por %p189, %p190
      %p192 = scmp.ne.s32.totalorder %s180, %s181
      %p193 = scmp.eq.s32.totalorder %s26, 15
      %p194 = por %p192, %p193
      %p196 = scmp.ne.s32.totalorder %s181, %s195
      %p197 = scmp.eq.s32.totalorder %s26, 0
      %p198 = por %p196, %p197
      %s200 = sadd.s32 %s199, 1
      %p203 = scmp.eq.s32.totalorder %s20, 15
      %p204 = scmp.ne.s32.totalorder %s199, %s201
      %p205 = scmp.eq.s32.totalorder %s20, 0
      %p206 = por %p204, %p205
      %p207 = scmp.ne.s32.totalorder %s199, %s201
      %p208 = scmp.eq.s32.totalorder %s25, 15
      %p209 = por %p207, %p208
      %p210 = scmp.ne.s32.totalorder %s201, %s202
      %p211 = scmp.eq.s32.totalorder %s25, 0
      %p212 = por %p210, %p211
      %p213 = scmp.ne.s32.totalorder %s201, %s202
      %p214 = scmp.eq.s32.totalorder %s26, 15
      %p215 = por %p213, %p214
      %p217 = scmp.ne.s32.totalorder %s202, %s216
      %p218 = scmp.eq.s32.totalorder %s26, 0
      %p219 = por %p217, %p218
      %s221 = sadd.s32 %s220, 1
      %p224 = scmp.eq.s32.totalorder %s20, 15
      %p225 = scmp.ne.s32.totalorder %s220, %s222
      %p226 = scmp.eq.s32.totalorder %s20, 0
      %p227 = por %p225, %p226
      %p228 = scmp.ne.s32.totalorder %s220, %s222
      %p229 = scmp.eq.s32.totalorder %s25, 15
      %p230 = por %p228, %p229
      %p231 = scmp.ne.s32.totalorder %s222, %s223
      %p232 = scmp.eq.s32.totalorder %s25, 0
      %p233 = por %p231, %p232
      %p234 = scmp.ne.s32.totalorder %s222, %s223
      %p235 = scmp.eq.s32.totalorder %s26, 15
      %p236 = por %p234, %p235
      %p238 = scmp.ne.s32.totalorder %s223, %s237
      %p239 = scmp.eq.s32.totalorder %s26, 0
      %p240 = por %p238, %p239
      %s241 = ssub.s32 %s27, %s39
      %s242 = ssub.s32 %s28, %s35
      %s243 = sor.u32 %s241, %s242
      %p244 = scmp.eq.s32.totalorder %s243, 0
      %s246 = sadd.s32 %s245, 1
      %s247 = scalar_select %p244, %s245, %s246
      %p250 = pneg %p244
      %p251 = scmp.eq.s32.totalorder %s20, 15
      %p252 = por %p250, %p251
      %p253 = scmp.ne.s32.totalorder %s245, %s248
      %p254 = scmp.eq.s32.totalorder %s20, 0
      %p255 = por %p253, %p254
      %p256 = scmp.ne.s32.totalorder %s245, %s248
      %p257 = scmp.eq.s32.totalorder %s25, 15
      %p258 = por %p256, %p257
      %p259 = scmp.ne.s32.totalorder %s248, %s249
      %p260 = scmp.eq.s32.totalorder %s25, 0
      %p261 = por %p259, %p260
      %p262 = scmp.ne.s32.totalorder %s248, %s249
      %p263 = scmp.eq.s32.totalorder %s26, 15
      %p264 = por %p262, %p263
      %p266 = scmp.ne.s32.totalorder %s249, %s265
      %p267 = scmp.eq.s32.totalorder %s26, 0
      %p268 = por %p266, %p267
      %s269 = ssub.s32 %s27, %s39
      %p270 = scmp.eq.s32.totalorder %s269, 0
      %s272 = sadd.s32 %s271, 1
      %s273 = scalar_select %p270, %s271, %s272
      %p276 = pneg %p270
      %p277 = scmp.eq.s32.totalorder %s20, 15
      %p278 = por %p276, %p277
      %p279 = scmp.ne.s32.totalorder %s271, %s274
      %p280 = scmp.eq.s32.totalorder %s20, 0
      %p281 = por %p279, %p280
      %p282 = scmp.ne.s32.totalorder %s271, %s274
      %p283 = scmp.eq.s32.totalorder %s25, 15
      %p284 = por %p282, %p283
      %p285 = scmp.ne.s32.totalorder %s274, %s275
      %p286 = scmp.eq.s32.totalorder %s25, 0
      %p287 = por %p285, %p286
      %p288 = scmp.ne.s32.totalorder %s274, %s275
      %p289 = scmp.eq.s32.totalorder %s26, 15
      %p290 = por %p288, %p289
      %p292 = scmp.ne.s32.totalorder %s275, %s291
      %p293 = scmp.eq.s32.totalorder %s26, 0
      %p294 = por %p292, %p293
      %p295 = scmp.le.s32.totalorder 1, %s20
      %p296 = scmp.lt.s32.totalorder %s20, 17
      %p297 = pnand %p295, %p296
      %p298 = pneg %p297
      // Predicated region
      $region9: #{tpu_custom_call.1} parent=5 // pred_check
        _
      $region10: #{tpu_custom_call.1} parent=5 // pred_check_branch
        %300 = sbr.rel (%p297) target = $region12
      $region11: #{tpu_custom_call.1} parent=5 // pred_region
        %s301 = ssub.s32 %s20, 1
        // Predicated region
        $region13: #{tpu_custom_call.1} parent=11 // pred_check
          %p302 = pneg %p107
        $region14: #{tpu_custom_call.1} parent=11 // pred_check_branch
          %304 = sbr.rel (%p302) target = $region16
        $region15: #{tpu_custom_call.1} parent=11 // pred_region
          _
        $region16: #{tpu_custom_call.1} parent=11 // pred_fallthru
          _
        // Predicated region
        $region17: #{tpu_custom_call.1} parent=11 // pred_check
          %p305 = pneg %p128
        $region18: #{tpu_custom_call.1} parent=11 // pred_check_branch
          %307 = sbr.rel (%p305) target = $region20
        $region19: #{tpu_custom_call.1} parent=11 // pred_region
          _
        $region20: #{tpu_custom_call.1} parent=11 // pred_fallthru
          _
        // Predicated region
        $region21: #{tpu_custom_call.1} parent=11 // pred_check
          %p308 = pneg %p149
        $region22: #{tpu_custom_call.1} parent=11 // pred_check_branch
          %310 = sbr.rel (%p308) target = $region24
        $region23: #{tpu_custom_call.1} parent=11 // pred_region
          _
        $region24: #{tpu_custom_call.1} parent=11 // pred_fallthru
          _
        // Predicated region
        $region25: #{tpu_custom_call.1} parent=11 // pred_check
          %p311 = pneg %p170
        $region26: #{tpu_custom_call.1} parent=11 // pred_check_branch
          %313 = sbr.rel (%p311) target = $region28
        $region27: #{tpu_custom_call.1} parent=11 // pred_region
          _
        $region28: #{tpu_custom_call.1} parent=11 // pred_fallthru
          _
        // Predicated region
        $region29: #{tpu_custom_call.1} parent=11 // pred_check
          %p314 = pneg %p191
        $region30: #{tpu_custom_call.1} parent=11 // pred_check_branch
          %316 = sbr.rel (%p314) target = $region32
        $region31: #{tpu_custom_call.1} parent=11 // pred_region
          _
        $region32: #{tpu_custom_call.1} parent=11 // pred_fallthru
          _
        // Predicated region
        $region33: #{tpu_custom_call.1} parent=11 // pred_check
          %p317 = pneg %p212
        $region34: #{tpu_custom_call.1} parent=11 // pred_check_branch
          %319 = sbr.rel (%p317) target = $region36
        $region35: #{tpu_custom_call.1} parent=11 // pred_region
          _
        $region36: #{tpu_custom_call.1} parent=11 // pred_fallthru
          _
        // Predicated region
        $region37: #{tpu_custom_call.1} parent=11 // pred_check
          %p320 = pneg %p233
        $region38: #{tpu_custom_call.1} parent=11 // pred_check_branch
          %322 = sbr.rel (%p320) target = $region40
        $region39: #{tpu_custom_call.1} parent=11 // pred_region
          _
        $region40: #{tpu_custom_call.1} parent=11 // pred_fallthru
          _
      $region12: #{tpu_custom_call.1} parent=5 // pred_fallthru
        _
      %p323 = scmp.lt.s32.totalorder %s20, 16
      // Predicated region
      $region41: #{tpu_custom_call.1} parent=5 // pred_check
        %p324 = pneg %p323
      $region42: #{tpu_custom_call.1} parent=5 // pred_check_branch
        %326 = sbr.rel (%p324) target = $region44
      $region43: #{tpu_custom_call.1} parent=5 // pred_region
        // Predicated region
        $region45: #{tpu_custom_call.1} parent=43 // pred_check
          %p327 = pneg %p54
        $region46: #{tpu_custom_call.1} parent=43 // pred_check_branch
          %329 = sbr.rel (%p327) target = $region48
        $region47: #{tpu_custom_call.1} parent=43 // pred_region
          %s330 = smul.u32 6, %s28
          %p331 = scmp.lt.s32.totalorder %s27, 15
          %s332 = scalar_select %p331, %s27, 15
          %p333 = scmp.lt.s32.totalorder %s330, 5
          %s334 = scalar_select %p333, %s330, 5
          %s335 = smul.addr %s332, 6
          %s336 = sadd.s32 %s334, %s335
          %s337 = smul.addr %s336, 8
          %s338 = scalar_lea.vmem %s0, %s337
          %s339 = smul.u32 6, %s28
        $region48: #{tpu_custom_call.1} parent=43 // pred_fallthru
          _
        // Predicated region
        $region49: #{tpu_custom_call.1} parent=43 // pred_check
          %p340 = pneg %p80
        $region50: #{tpu_custom_call.1} parent=43 // pred_check_branch
          %342 = sbr.rel (%p340) target = $region52
        $region51: #{tpu_custom_call.1} parent=43 // pred_region
          %p343 = scmp.lt.s32.totalorder %s27, 15
          %s344 = scalar_select %p343, %s27, 15
          %s345 = smul.addr %s344, 6
          %s346 = smul.addr %s345, 8
          %s347 = scalar_lea.vmem %s1, %s346
        $region52: #{tpu_custom_call.1} parent=43 // pred_fallthru
          _
      $region44: #{tpu_custom_call.1} parent=5 // pred_fallthru
        _
      %p348 = scmp.le.s32.totalorder 1, %s20
      %p349 = scmp.lt.s32.totalorder %s20, 17
      %p350 = pnand %p348, %p349
      %p351 = pneg %p350
      // Predicated region
      $region53: #{tpu_custom_call.1} parent=5 // pred_check
        _
      $region54: #{tpu_custom_call.1} parent=5 // pred_check_branch
        %353 = sbr.rel (%p350) target = $region56
      $region55: #{tpu_custom_call.1} parent=5 // pred_region
        %s354 = ssub.s32 %s20, 1
        %s355 = smul.u32 6, %s30
        %p356 = scmp.lt.s32.totalorder %s29, 15
        %s357 = scalar_select %p356, %s29, 15
        %p358 = scmp.lt.s32.totalorder %s355, 5
        %s359 = scalar_select %p358, %s355, 5
        %s360 = smul.addr %s357, 6
        %s361 = sadd.s32 %s359, %s360
        %s362 = smul.addr %s361, 8
        %s363 = scalar_lea.vmem %s0, %s362
        %p364 = pneg %p60
        %p365 = pneg %p57
        %p366 = scmp.lt.s32.totalorder %s29, 15
        %s367 = scalar_select %p366, %s29, 15
        %s368 = smul.addr %s367, 6
        %s369 = smul.addr %s368, 8
        %s370 = scalar_lea.vmem %s1, %s369
        %p371 = pneg %p86
        %p372 = pneg %p83
        %p373 = pneg %p107
        %p374 = pneg %p104
        %p375 = pneg %p128
        %p376 = pneg %p125
        %p377 = pneg %p149
        %p378 = pneg %p146
        %p379 = pneg %p170
        %p380 = pneg %p167
        %p381 = pneg %p191
        %p382 = pneg %p188
        %p383 = pneg %p212
        %p384 = pneg %p209
        %p385 = pneg %p233
        %p386 = pneg %p230
        %p387 = pneg %p261
        %p388 = pneg %p258
        %s389 = smul.u32 6, %s30
        %p390 = scmp.lt.s32.totalorder %s29, 15
        %s391 = scalar_select %p390, %s29, 15
        %p392 = scmp.lt.s32.totalorder %s389, 5
        %s393 = scalar_select %p392, %s389, 5
        %s394 = smul.addr %s391, 6
        %s395 = sadd.s32 %s393, %s394
        %s396 = smul.addr %s395, 8
        %s397 = scalar_lea.vmem %s9, %s396
        %p398 = pneg %p287
        %p399 = pneg %p284
        %s400 = sand.u32 %s274, 1
        %s401 = scalar_lea.sflag [#allocation6], %s400
        %s402 = sand.u32 %s274, 1
        %s403 = scalar_lea.vmem [#allocation5], %s402
        %s404 = smul.u32 6, %s30
        %p405 = scmp.lt.s32.totalorder %s29, 15
        %s406 = scalar_select %p405, %s29, 15
        %p407 = scmp.lt.s32.totalorder %s404, 5
        %s408 = scalar_select %p407, %s404, 5
        %s409 = smul.addr %s406, 6
        %s410 = sadd.s32 %s408, %s409
        %s411 = smul.addr %s410, 8
        %s412 = scalar_lea.vmem %s0, %s411
        %s413 = smul.u32 6, %s30
        %p414 = scmp.lt.s32.totalorder %s29, 15
        %s415 = scalar_select %p414, %s29, 15
        %s416 = smul.addr %s415, 6
        %s417 = smul.addr %s416, 8
        %s418 = scalar_lea.vmem %s1, %s417
        %s419 = smul.u32 6, %s30
        %p420 = scmp.lt.s32.totalorder %s29, 15
        %s421 = scalar_select %p420, %s29, 15
        %p422 = scmp.lt.s32.totalorder %s419, 5
        %s423 = scalar_select %p422, %s419, 5
        %s424 = smul.addr %s421, 6
        %s425 = sadd.s32 %s423, %s424
        %s426 = smul.addr %s425, 8
        %s427 = scalar_lea.vmem %s9, %s426
        %s428 = smul.u32 6, %s30
        %p429 = scmp.eq.s32.totalorder %s30, 0
        // Predicated region
        $region57: #{tpu_custom_call.1} parent=55 // pred_check
          %p430 = pneg %p429
        $region58: #{tpu_custom_call.1} parent=55 // pred_check_branch
          %432 = sbr.rel (%p430) target = $region60
        $region59: #{tpu_custom_call.1} parent=55 // pred_region
          %v433 = vld [vmem:[%s418] sm:$0xff]
          %v434 = vld [vmem:[%s418 + $0x8] sm:$0xff]
          %v435 = vld [vmem:[%s418 + $0x10] sm:$0xff]
          %v436 = vld [vmem:[%s418 + $0x18] sm:$0xff]
          %v437 = vld [vmem:[%s418 + $0x20] sm:$0xff]
          %v438 = vld [vmem:[%s418 + $0x28] sm:$0xff]
          %v439 = vld [vmem:[%s4] sm:$0xff]
          %v440 = vld [vmem:[%s4 + $0x8] sm:$0xff]
          %v441 = vld [vmem:[%s5] sm:$0x1]
          %v443 = vlaneseq
          %v444 = vshrl.u32 %v443, 7
          %v445 = vsub.s32 0, %v444
          %v446 = vrot.slane %v441, %v445
          %vm448 = vcmask 130048
          %v450 = vsel %vm448, %v433, 0
          %v453 = vsel %vm448, %v434, 0
          %v456 = vsel %vm448, %v435, 0
          %v459 = vsel %vm448, %v436, 0
          %v462 = vsel %vm448, %v437, 0
          %v465 = vsel %vm448, %v438, 0
          %467 = vmatprep.subr.mxu0 0.0
          %468 = vmatpush1.msra.mxu0 %v439
          %469 = vmatprep.subr.mxu0 0.0
          %470 = vmatpush1.msra.mxu0 %v440
          %471 = vmatprep.subr.mxu0 0.0
          %472 = vmatpush1.msra.mxu0 0.0
          %473 = vmatprep.subr.mxu0 0.0
          %474 = vmatpush1.msra.mxu0 0.0
          %475 = vmatprep.subr.mxu0 0.0
          %476 = vmatpush1.msra.mxu0 0.0
          %477 = vmatprep.subr.mxu0 0.0
          %478 = vmatpush1.msra.mxu0 0.0
          %479 = vmatprep.subr.mxu0 0.0
          %480 = vmatpush1.msra.mxu0 0.0
          %481 = vmatprep.subr.mxu0 0.0
          %482 = vmatpush1.msra.mxu0 0.0
          %483 = vmatprep.subr.mxu0 0.0
          %484 = vmatpush1.msra.mxu0 0.0
          %485 = vmatprep.subr.mxu0 0.0
          %486 = vmatpush1.msra.mxu0 0.0
          %487 = vmatprep.subr.mxu0 0.0
          %488 = vmatpush1.msra.mxu0 0.0
          %489 = vmatprep.subr.mxu0 0.0
          %490 = vmatpush1.msra.mxu0 0.0
          %491 = vmatprep.subr.mxu0 0.0
          %492 = vmatpush1.msra.mxu0 0.0
          %493 = vmatprep.subr.mxu0 0.0
          %494 = vmatpush1.msra.mxu0 0.0
          %495 = vmatprep.subr.mxu0 0.0
          %496 = vmatpush1.msra.mxu0 0.0
          %497 = vmatprep.subr.mxu0 0.0
          %498 = vmatpush1.msra.mxu0 0.0
          %499 = vmatprep.subr.mxu0 0.0
          %500 = vmatpush1.msra.mxu0 0.0
          %501 = vmatprep.subr.mxu0 0.0
          %502 = vmatpush1.msra.mxu0 0.0
          %503 = vmatprep.subr.mxu0 0.0
          %504 = vmatpush1.msra.mxu0 0.0
          %505 = vmatprep.subr.mxu0 0.0
          %506 = vmatpush1.msra.mxu0 0.0
          %507 = vmatprep.subr.mxu0 0.0
          %508 = vmatpush1.msra.mxu0 0.0
          %509 = vmatprep.subr.mxu0 0.0
          %510 = vmatpush1.msra.mxu0 0.0
          %511 = vmatprep.subr.mxu0 0.0
          %512 = vmatpush1.msra.mxu0 0.0
          %513 = vmatprep.subr.mxu0 0.0
          %514 = vmatpush1.msra.mxu0 0.0
          %515 = vmatprep.subr.mxu0 0.0
          %516 = vmatpush1.msra.mxu0 0.0
          %517 = vmatprep.subr.mxu0 0.0
          %518 = vmatpush1.msra.mxu0 0.0
          %519 = vmatprep.subr.mxu0 0.0
          %520 = vmatpush1.msra.mxu0 0.0
          %521 = vmatprep.subr.mxu0 0.0
          %522 = vmatpush1.msra.mxu0 0.0
          %523 = vmatprep.subr.mxu0 0.0
          %524 = vmatpush1.msra.mxu0 0.0
          %525 = vmatprep.subr.mxu0 0.0
          %526 = vmatpush1.msra.mxu0 0.0
          %527 = vmatprep.subr.mxu0 0.0
          %528 = vmatpush1.msra.mxu0 0.0
          %529 = vmatprep.subr.mxu0 0.0
          %530 = vmatpush1.msra.mxu0 0.0
          %531 = vmatprep.mubr.f32.mxu0 0.0
          %532 = vmatmul.mubr.f32.gmra.mrb[0].mxu0 %v450
          %v533 = vpop.f32.mrb[0].mxu0
          %v534 = vadd.f32 %v446, %v533
          %v535 = vpop.f32.mrb[0].mxu0
          %536 = vmatprep.mubr.f32.mxu0 0.0
          %537 = vmatmul.mubr.f32.gmra.mrb[0].mxu0 %v453
          %v538 = vpop.f32.mrb[0].mxu0
          %v539 = vadd.f32 %v446, %v538
          %v540 = vpop.f32.mrb[0].mxu0
          %541 = vmatprep.mubr.f32.mxu0 0.0
          %542 = vmatmul.mubr.f32.gmra.mrb[0].mxu0 %v456
          %v543 = vpop.f32.mrb[0].mxu0
          %v544 = vadd.f32 %v446, %v543
          %v545 = vpop.f32.mrb[0].mxu0
          %546 = vmatprep.mubr.f32.mxu0 0.0
          %547 = vmatmul.mubr.f32.gmra.mrb[0].mxu0 %v459
          %v548 = vpop.f32.mrb[0].mxu0
          %v549 = vadd.f32 %v446, %v548
          %v550 = vpop.f32.mrb[0].mxu0
          %551 = vmatprep.mubr.f32.mxu0 0.0
          %552 = vmatmul.mubr.f32.gmra.mrb[0].mxu0 %v462
          %v553 = vpop.f32.mrb[0].mxu0
          %v554 = vadd.f32 %v446, %v553
          %v555 = vpop.f32.mrb[0].mxu0
          %556 = vmatprep.mubr.f32.mxu0 0.0
          %557 = vmatmul.mubr.f32.gmra.mrb[0].mxu0 %v465
          %v558 = vpop.f32.mrb[0].mxu0
          %v559 = vadd.f32 %v446, %v558
          %v560 = vpop.f32.mrb[0].mxu0
          %561 = vdwg.mxu0
          %vm562 = vcmask 64512
          %563 = vst.msk [vmem:[#allocation2] sm:$0xff] %vm562, %v534
          %564 = vst.msk [vmem:[#allocation2 + $0x8] sm:$0xff] %vm562, %v539
          %565 = vst.msk [vmem:[#allocation2 + $0x10] sm:$0xff] %vm562, %v544
          %566 = vst.msk [vmem:[#allocation2 + $0x18] sm:$0xff] %vm562, %v549
          %567 = vst.msk [vmem:[#allocation2 + $0x20] sm:$0xff] %vm562, %v554
          %568 = vst.msk [vmem:[#allocation2 + $0x28] sm:$0xff] %vm562, %v559
          %v569 = vld [vmem:[%s6] sm:$0xff]
          %v570 = vld [vmem:[%s6 + $0x8] sm:$0xff]
          %v571 = vld [vmem:[%s7] sm:$0x1]
          %v573 = vlaneseq
          %v574 = vshrl.u32 %v573, 7
          %v575 = vsub.s32 0, %v574
          %v576 = vrot.slane %v571, %v575
          %578 = vmatprep.subr.mxu0 0.0
          %579 = vmatpush1.msra.mxu0 %v569
          %580 = vmatprep.subr.mxu0 0.0
          %581 = vmatpush1.msra.mxu0 %v570
          %582 = vmatprep.subr.mxu0 0.0
          %583 = vmatpush1.msra.mxu0 0.0
          %584 = vmatprep.subr.mxu0 0.0
          %585 = vmatpush1.msra.mxu0 0.0
          %586 = vmatprep.subr.mxu0 0.0
          %587 = vmatpush1.msra.mxu0 0.0
          %588 = vmatprep.subr.mxu0 0.0
          %589 = vmatpush1.msra.mxu0 0.0
          %590 = vmatprep.subr.mxu0 0.0
          %591 = vmatpush1.msra.mxu0 0.0
          %592 = vmatprep.subr.mxu0 0.0
          %593 = vmatpush1.msra.mxu0 0.0
          %594 = vmatprep.subr.mxu0 0.0
          %595 = vmatpush1.msra.mxu0 0.0
          %596 = vmatprep.subr.mxu0 0.0
          %597 = vmatpush1.msra.mxu0 0.0
          %598 = vmatprep.subr.mxu0 0.0
          %599 = vmatpush1.msra.mxu0 0.0
          %600 = vmatprep.subr.mxu0 0.0
          %601 = vmatpush1.msra.mxu0 0.0
          %602 = vmatprep.subr.mxu0 0.0
          %603 = vmatpush1.msra.mxu0 0.0
          %604 = vmatprep.subr.mxu0 0.0
          %605 = vmatpush1.msra.mxu0 0.0
          %606 = vmatprep.subr.mxu0 0.0
          %607 = vmatpush1.msra.mxu0 0.0
          %608 = vmatprep.subr.mxu0 0.0
          %609 = vmatpush1.msra.mxu0 0.0
          %610 = vmatprep.subr.mxu0 0.0
          %611 = vmatpush1.msra.mxu0 0.0
          %612 = vmatprep.subr.mxu0 0.0
          %613 = vmatpush1.msra.mxu0 0.0
          %614 = vmatprep.subr.mxu0 0.0
          %615 = vmatpush1.msra.mxu0 0.0
          %616 = vmatprep.subr.mxu0 0.0
          %617 = vmatpush1.msra.mxu0 0.0
          %618 = vmatprep.subr.mxu0 0.0
          %619 = vmatpush1.msra.mxu0 0.0
          %620 = vmatprep.subr.mxu0 0.0
          %621 = vmatpush1.msra.mxu0 0.0
          %622 = vmatprep.subr.mxu0 0.0
          %623 = vmatpush1.msra.mxu0 0.0
          %624 = vmatprep.subr.mxu0 0.0
          %625 = vmatpush1.msra.mxu0 0.0
          %626 = vmatprep.subr.mxu0 0.0
          %627 = vmatpush1.msra.mxu0 0.0
          %628 = vmatprep.subr.mxu0 0.0
          %629 = vmatpush1.msra.mxu0 0.0
          %630 = vmatprep.subr.mxu0 0.0
          %631 = vmatpush1.msra.mxu0 0.0
          %632 = vmatprep.subr.mxu0 0.0
          %633 = vmatpush1.msra.mxu0 0.0
          %634 = vmatprep.subr.mxu0 0.0
          %635 = vmatpush1.msra.mxu0 0.0
          %636 = vmatprep.subr.mxu0 0.0
          %637 = vmatpush1.msra.mxu0 0.0
          %638 = vmatprep.subr.mxu0 0.0
          %639 = vmatpush1.msra.mxu0 0.0
          %640 = vmatprep.subr.mxu0 0.0
          %641 = vmatpush1.msra.mxu0 0.0
          %642 = vmatprep.mubr.f32.mxu0 0.0
          %643 = vmatmul.mubr.f32.gmra.mrb[0].mxu0 %v450
          %v644 = vpop.f32.mrb[0].mxu0
          %v645 = vadd.f32 %v576, %v644
          %v646 = vpop.f32.mrb[0].mxu0
          %647 = vmatprep.mubr.f32.mxu0 0.0
          %648 = vmatmul.mubr.f32.gmra.mrb[0].mxu0 %v453
          %v649 = vpop.f32.mrb[0].mxu0
          %v650 = vadd.f32 %v576, %v649
          %v651 = vpop.f32.mrb[0].mxu0
          %652 = vmatprep.mubr.f32.mxu0 0.0
          %653 = vmatmul.mubr.f32.gmra.mrb[0].mxu0 %v456
          %v654 = vpop.f32.mrb[0].mxu0
          %v655 = vadd.f32 %v576, %v654
          %v656 = vpop.f32.mrb[0].mxu0
          %657 = vmatprep.mubr.f32.mxu0 0.0
          %658 = vmatmul.mubr.f32.gmra.mrb[0].mxu0 %v459
          %v659 = vpop.f32.mrb[0].mxu0
          %v660 = vadd.f32 %v576, %v659
          %v661 = vpop.f32.mrb[0].mxu0
          %662 = vmatprep.mubr.f32.mxu0 0.0
          %663 = vmatmul.mubr.f32.gmra.mrb[0].mxu0 %v462
          %v664 = vpop.f32.mrb[0].mxu0
          %v665 = vadd.f32 %v576, %v664
          %v666 = vpop.f32.mrb[0].mxu0
          %667 = vmatprep.mubr.f32.mxu0 0.0
          %668 = vmatmul.mubr.f32.gmra.mrb[0].mxu0 %v465
          %v669 = vpop.f32.mrb[0].mxu0
          %v670 = vadd.f32 %v576, %v669
          %v671 = vpop.f32.mrb[0].mxu0
          %672 = vdwg.mxu0
          %673 = vst.msk [vmem:[#allocation3] sm:$0xff] %vm448, %v645
          %674 = vst.msk [vmem:[#allocation3 + $0x8] sm:$0xff] %vm448, %v650
          %675 = vst.msk [vmem:[#allocation3 + $0x10] sm:$0xff] %vm448, %v655
          %676 = vst.msk [vmem:[#allocation3 + $0x18] sm:$0xff] %vm448, %v660
          %677 = vst.msk [vmem:[#allocation3 + $0x20] sm:$0xff] %vm448, %v665
          %678 = vst.msk [vmem:[#allocation3 + $0x28] sm:$0xff] %vm448, %v670
          %vm679 = vcmask 138368
          %680 = vst.msk [vmem:[#allocation3] sm:$0xff] %vm679, 1.0
          %681 = vst.msk [vmem:[#allocation3 + $0x8] sm:$0xff] %vm679, 1.0
          %682 = vst.msk [vmem:[#allocation3 + $0x10] sm:$0xff] %vm679, 1.0
          %683 = vst.msk [vmem:[#allocation3 + $0x18] sm:$0xff] %vm679, 1.0
          %684 = vst.msk [vmem:[#allocation3 + $0x20] sm:$0xff] %vm679, 1.0
          %685 = vst.msk [vmem:[#allocation3 + $0x28] sm:$0xff] %vm679, 1.0
          %v686 = vlaneseq
          %v687 = vand.u32 %v686, 127
          %vm688 = vcmp.lt.s32.totalorder %v687, 0
          %v689 = vsub.s32 0, %v687
          %v690 = vsel %vm688, %v689, %v687
          %v691 = vshrl.u32 %v690, 4
          %v692 = vand.u32 %v690, 15
          %v693 = vsub.s32 0, %v692
          %v694 = vsel %vm688, %v693, %v692
          %vm695 = vcmp.ne.s32.totalorder %v694, 0
          %vm696 = vcmp.lt.s32.totalorder %v694, 0
          %vm697 = vmand %vm696, %vm695
          %v698 = vadd.s32 %v694, 16
          %v699 = vsel %vm697, %v698, %v694
          %v700 = vcvt.s32.f32 %v699
          %vm701 = vcmask 385024
          %702 = vst.msk [vmem:[#allocation4] sm:$0x1] %vm701, %v700
          %703 = vst.msk [vmem:[#allocation4 + $0x1] sm:$0x1] %vm701, 1.0
        $region60: #{tpu_custom_call.1} parent=55 // pred_fallthru
          _
        %v704 = vld [vmem:[%s412] sm:$0xff]
        %v705 = vld [vmem:[%s412 + $0x8] sm:$0xff]
        %v706 = vld [vmem:[%s412 + $0x10] sm:$0xff]
        %v707 = vld [vmem:[%s412 + $0x18] sm:$0xff]
        %v708 = vld [vmem:[%s412 + $0x20] sm:$0xff]
        %v709 = vld [vmem:[%s412 + $0x28] sm:$0xff]
        %v710 = vld [vmem:[%s2] sm:$0xff]
        %v711 = vld [vmem:[%s2 + $0x8] sm:$0xff]
        %v712 = vld [vmem:[%s3] sm:$0x1]
        %v714 = vlaneseq
        %v715 = vshrl.u32 %v714, 7
        %v716 = vsub.s32 0, %v715
        %v717 = vrot.slane %v712, %v716
        %vm719 = vcmask 130048
        %v721 = vsel %vm719, %v704, 0
        %v724 = vsel %vm719, %v705, 0
        %v727 = vsel %vm719, %v706, 0
        %v730 = vsel %vm719, %v707, 0
        %v733 = vsel %vm719, %v708, 0
        %v736 = vsel %vm719, %v709, 0
        %738 = vmatprep.subr.mxu0 0.0
        %739 = vmatpush1.msra.mxu0 %v710
        %740 = vmatprep.subr.mxu0 0.0
        %741 = vmatpush1.msra.mxu0 %v711
        %742 = vmatprep.subr.mxu0 0.0
        %743 = vmatpush1.msra.mxu0 0.0
        %744 = vmatprep.subr.mxu0 0.0
        %745 = vmatpush1.msra.mxu0 0.0
        %746 = vmatprep.subr.mxu0 0.0
        %747 = vmatpush1.msra.mxu0 0.0
        %748 = vmatprep.subr.mxu0 0.0
        %749 = vmatpush1.msra.mxu0 0.0
        %750 = vmatprep.subr.mxu0 0.0
        %751 = vmatpush1.msra.mxu0 0.0
        %752 = vmatprep.subr.mxu0 0.0
        %753 = vmatpush1.msra.mxu0 0.0
        %754 = vmatprep.subr.mxu0 0.0
        %755 = vmatpush1.msra.mxu0 0.0
        %756 = vmatprep.subr.mxu0 0.0
        %757 = vmatpush1.msra.mxu0 0.0
        %758 = vmatprep.subr.mxu0 0.0
        %759 = vmatpush1.msra.mxu0 0.0
        %760 = vmatprep.subr.mxu0 0.0
        %761 = vmatpush1.msra.mxu0 0.0
        %762 = vmatprep.subr.mxu0 0.0
        %763 = vmatpush1.msra.mxu0 0.0
        %764 = vmatprep.subr.mxu0 0.0
        %765 = vmatpush1.msra.mxu0 0.0
        %766 = vmatprep.subr.mxu0 0.0
        %767 = vmatpush1.msra.mxu0 0.0
        %768 = vmatprep.subr.mxu0 0.0
        %769 = vmatpush1.msra.mxu0 0.0
        %770 = vmatprep.subr.mxu0 0.0
        %771 = vmatpush1.msra.mxu0 0.0
        %772 = vmatprep.subr.mxu0 0.0
        %773 = vmatpush1.msra.mxu0 0.0
        %774 = vmatprep.subr.mxu0 0.0
        %775 = vmatpush1.msra.mxu0 0.0
        %776 = vmatprep.subr.mxu0 0.0
        %777 = vmatpush1.msra.mxu0 0.0
        %778 = vmatprep.subr.mxu0 0.0
        %779 = vmatpush1.msra.mxu0 0.0
        %780 = vmatprep.subr.mxu0 0.0
        %781 = vmatpush1.msra.mxu0 0.0
        %782 = vmatprep.subr.mxu0 0.0
        %783 = vmatpush1.msra.mxu0 0.0
        %784 = vmatprep.subr.mxu0 0.0
        %785 = vmatpush1.msra.mxu0 0.0
        %786 = vmatprep.subr.mxu0 0.0
        %787 = vmatpush1.msra.mxu0 0.0
        %788 = vmatprep.subr.mxu0 0.0
        %789 = vmatpush1.msra.mxu0 0.0
        %790 = vmatprep.subr.mxu0 0.0
        %791 = vmatpush1.msra.mxu0 0.0
        %792 = vmatprep.subr.mxu0 0.0
        %793 = vmatpush1.msra.mxu0 0.0
        %794 = vmatprep.subr.mxu0 0.0
        %795 = vmatpush1.msra.mxu0 0.0
        %796 = vmatprep.subr.mxu0 0.0
        %797 = vmatpush1.msra.mxu0 0.0
        %798 = vmatprep.subr.mxu0 0.0
        %799 = vmatpush1.msra.mxu0 0.0
        %800 = vmatprep.subr.mxu0 0.0
        %801 = vmatpush1.msra.mxu0 0.0
        %802 = vmatprep.mubr.f32.mxu0 0.0
        %803 = vmatmul.mubr.f32.gmra.mrb[0].mxu0 %v721
        %v804 = vpop.f32.mrb[0].mxu0
        %v805 = vadd.f32 %v717, %v804
        %v806 = vpop.f32.mrb[0].mxu0
        %807 = vmatprep.mubr.f32.mxu0 0.0
        %808 = vmatmul.mubr.f32.gmra.mrb[0].mxu0 %v724
        %v809 = vpop.f32.mrb[0].mxu0
        %v810 = vadd.f32 %v717, %v809
        %v811 = vpop.f32.mrb[0].mxu0
        %812 = vmatprep.mubr.f32.mxu0 0.0
        %813 = vmatmul.mubr.f32.gmra.mrb[0].mxu0 %v727
        %v814 = vpop.f32.mrb[0].mxu0
        %v815 = vadd.f32 %v717, %v814
        %v816 = vpop.f32.mrb[0].mxu0
        %817 = vmatprep.mubr.f32.mxu0 0.0
        %818 = vmatmul.mubr.f32.gmra.mrb[0].mxu0 %v730
        %v819 = vpop.f32.mrb[0].mxu0
        %v820 = vadd.f32 %v717, %v819
        %v821 = vpop.f32.mrb[0].mxu0
        %822 = vmatprep.mubr.f32.mxu0 0.0
        %823 = vmatmul.mubr.f32.gmra.mrb[0].mxu0 %v733
        %v824 = vpop.f32.mrb[0].mxu0
        %v825 = vadd.f32 %v717, %v824
        %v826 = vpop.f32.mrb[0].mxu0
        %827 = vmatprep.mubr.f32.mxu0 0.0
        %828 = vmatmul.mubr.f32.gmra.mrb[0].mxu0 %v736
        %v829 = vpop.f32.mrb[0].mxu0
        %v830 = vadd.f32 %v717, %v829
        %v831 = vpop.f32.mrb[0].mxu0
        %832 = vdwg.mxu0
        %v833 = vld [vmem:[#allocation2] sm:$0xff]
        %v834 = vld [vmem:[#allocation2 + $0x8] sm:$0xff]
        %v835 = vld [vmem:[#allocation2 + $0x10] sm:$0xff]
        %v836 = vld [vmem:[#allocation2 + $0x18] sm:$0xff]
        %v837 = vld [vmem:[#allocation2 + $0x20] sm:$0xff]
        %v838 = vld [vmem:[#allocation2 + $0x28] sm:$0xff]
        %vm839 = vcmask 64512
        %v841 = vsel %vm839, %v805, 0
        %v844 = vsel %vm839, %v810, 0
        %v847 = vsel %vm839, %v815, 0
        %v850 = vsel %vm839, %v820, 0
        %v853 = vsel %vm839, %v825, 0
        %v856 = vsel %vm839, %v830, 0
        %v859 = vsel %vm839, %v833, 0
        %v862 = vsel %vm839, %v834, 0
        %v865 = vsel %vm839, %v835, 0
        %v868 = vsel %vm839, %v836, 0
        %v871 = vsel %vm839, %v837, 0
        %v874 = vsel %vm839, %v838, 0
        %876 = vmatprep.subr.mxu0 0.0
        %877 = vmatpush1.xpose.msra.mxu0 %v859
        %878 = vmatprep.subr.mxu0 0.0
        %879 = vmatpush1.xpose.msra.mxu0 %v862
        %880 = vmatprep.subr.mxu0 0.0
        %881 = vmatpush1.xpose.msra.mxu0 %v865
        %882 = vmatprep.subr.mxu0 0.0
        %883 = vmatpush1.xpose.msra.mxu0 %v868
        %884 = vmatprep.subr.mxu0 0.0
        %885 = vmatpush1.xpose.msra.mxu0 %v871
        %886 = vmatprep.subr.mxu0 0.0
        %887 = vmatpush1.xpose.msra.mxu0 %v874
        %888 = vmatprep.subr.mxu0 0.0
        %889 = vmatpush1.xpose.msra.mxu0 0.0
        %890 = vmatprep.subr.mxu0 0.0
        %891 = vmatpush1.xpose.msra.mxu0 0.0
        %892 = vmatprep.subr.mxu0 0.0
        %893 = vmatpush1.xpose.msra.mxu0 0.0
        %894 = vmatprep.subr.mxu0 0.0
        %895 = vmatpush1.xpose.msra.mxu0 0.0
        %896 = vmatprep.subr.mxu0 0.0
        %897 = vmatpush1.xpose.msra.mxu0 0.0
        %898 = vmatprep.subr.mxu0 0.0
        %899 = vmatpush1.xpose.msra.mxu0 0.0
        %900 = vmatprep.subr.mxu0 0.0
        %901 = vmatpush1.xpose.msra.mxu0 0.0
        %902 = vmatprep.subr.mxu0 0.0
        %903 = vmatpush1.xpose.msra.mxu0 0.0
        %904 = vmatprep.subr.mxu0 0.0
        %905 = vmatpush1.xpose.msra.mxu0 0.0
        %906 = vmatprep.subr.mxu0 0.0
        %907 = vmatpush1.xpose.msra.mxu0 0.0
        %908 = vmatprep.subr.mxu0 0.0
        %909 = vmatpush1.xpose.msra.mxu0 0.0
        %910 = vmatprep.subr.mxu0 0.0
        %911 = vmatpush1.xpose.msra.mxu0 0.0
        %912 = vmatprep.subr.mxu0 0.0
        %913 = vmatpush1.xpose.msra.mxu0 0.0
        %914 = vmatprep.subr.mxu0 0.0
        %915 = vmatpush1.xpose.msra.mxu0 0.0
        %916 = vmatprep.subr.mxu0 0.0
        %917 = vmatpush1.xpose.msra.mxu0 0.0
        %918 = vmatprep.subr.mxu0 0.0
        %919 = vmatpush1.xpose.msra.mxu0 0.0
        %920 = vmatprep.subr.mxu0 0.0
        %921 = vmatpush1.xpose.msra.mxu0 0.0
        %922 = vmatprep.subr.mxu0 0.0
        %923 = vmatpush1.xpose.msra.mxu0 0.0
        %924 = vmatprep.subr.mxu0 0.0
        %925 = vmatpush1.xpose.msra.mxu0 0.0
        %926 = vmatprep.subr.mxu0 0.0
        %927 = vmatpush1.xpose.msra.mxu0 0.0
        %928 = vmatprep.subr.mxu0 0.0
        %929 = vmatpush1.xpose.msra.mxu0 0.0
        %930 = vmatprep.subr.mxu0 0.0
        %931 = vmatpush1.xpose.msra.mxu0 0.0
        %932 = vmatprep.subr.mxu0 0.0
        %933 = vmatpush1.xpose.msra.mxu0 0.0
        %934 = vmatprep.subr.mxu0 0.0
        %935 = vmatpush1.xpose.msra.mxu0 0.0
        %936 = vmatprep.subr.mxu0 0.0
        %937 = vmatpush1.xpose.msra.mxu0 0.0
        %938 = vmatprep.subr.mxu0 0.0
        %939 = vmatpush1.xpose.msra.mxu0 0.0
        %940 = vmatprep.mubr.f32.mxu0 0.0
        %941 = vmatmul.mubr.f32.gmra.mrb[0].mxu0 %v841
        %v942 = vpop.f32.mrb[0].mxu0
        %v943 = vadd.f32 0.0, %v942
        %v944 = vpop.f32.mrb[0].mxu0
        %945 = vmatprep.mubr.f32.mxu0 0.0
        %946 = vmatmul.mubr.f32.gmra.mrb[0].mxu0 %v844
        %v947 = vpop.f32.mrb[0].mxu0
        %v948 = vadd.f32 0.0, %v947
        %v949 = vpop.f32.mrb[0].mxu0
        %950 = vmatprep.mubr.f32.mxu0 0.0
        %951 = vmatmul.mubr.f32.gmra.mrb[0].mxu0 %v847
        %v952 = vpop.f32.mrb[0].mxu0
        %v953 = vadd.f32 0.0, %v952
        %v954 = vpop.f32.mrb[0].mxu0
        %955 = vmatprep.mubr.f32.mxu0 0.0
        %956 = vmatmul.mubr.f32.gmra.mrb[0].mxu0 %v850
        %v957 = vpop.f32.mrb[0].mxu0
        %v958 = vadd.f32 0.0, %v957
        %v959 = vpop.f32.mrb[0].mxu0
        %960 = vmatprep.mubr.f32.mxu0 0.0
        %961 = vmatmul.mubr.f32.gmra.mrb[0].mxu0 %v853
        %v962 = vpop.f32.mrb[0].mxu0
        %v963 = vadd.f32 0.0, %v962
        %v964 = vpop.f32.mrb[0].mxu0
        %965 = vmatprep.mubr.f32.mxu0 0.0
        %966 = vmatmul.mubr.f32.gmra.mrb[0].mxu0 %v856
        %v967 = vpop.f32.mrb[0].mxu0
        %v968 = vadd.f32 0.0, %v967
        %v969 = vpop.f32.mrb[0].mxu0
        %970 = vdwg.mxu0
        %vm971 = vcmask 392192
        %v972 = vsel %vm971, %v943, -inf
        %973 = vmax.xlane.f32.xlu0 %v972
        %v974 = vpop.xlane.xlu0 %973
        %v975 = vsel %vm971, %v948, -inf
        %976 = vmax.xlane.f32.xlu0 %v975
        %v977 = vpop.xlane.xlu0 %976
        %v978 = vsel %vm971, %v953, -inf
        %979 = vmax.xlane.f32.xlu0 %v978
        %v980 = vpop.xlane.xlu0 %979
        %v981 = vsel %vm971, %v958, -inf
        %982 = vmax.xlane.f32.xlu0 %v981
        %v983 = vpop.xlane.xlu0 %982
        %v984 = vsel %vm971, %v963, -inf
        %985 = vmax.xlane.f32.xlu0 %v984
        %v986 = vpop.xlane.xlu0 %985
        %v987 = vsel %vm971, %v968, -inf
        %988 = vmax.xlane.f32.xlu0 %v987
        %v989 = vpop.xlane.xlu0 %988
        %v990 = vsub.f32 %v943, %v974
        %v991 = vsub.f32 %v948, %v977
        %v992 = vsub.f32 %v953, %v980
        %v993 = vsub.f32 %v958, %v983
        %v994 = vsub.f32 %v963, %v986
        %v995 = vsub.f32 %v968, %v989
        %v996 = vmul.f32 %v990, 1.442695
        %v997 = vpow.pop %v996
        %v998 = vmul.f32 %v991, 1.442695
        %v999 = vpow.pop %v998
        %v1000 = vmul.f32 %v992, 1.442695
        %v1001 = vpow.pop %v1000
        %v1002 = vmul.f32 %v993, 1.442695
        %v1003 = vpow.pop %v1002
        %v1004 = vmul.f32 %v994, 1.442695
        %v1005 = vpow.pop %v1004
        %v1006 = vmul.f32 %v995, 1.442695
        %v1007 = vpow.pop %v1006
        %v1008 = vld [vmem:[#allocation3] sm:$0xff]
        %v1009 = vld [vmem:[#allocation3 + $0x8] sm:$0xff]
        %v1010 = vld [vmem:[#allocation3 + $0x10] sm:$0xff]
        %v1011 = vld [vmem:[#allocation3 + $0x18] sm:$0xff]
        %v1012 = vld [vmem:[#allocation3 + $0x20] sm:$0xff]
        %v1013 = vld [vmem:[#allocation3 + $0x28] sm:$0xff]
        %v1015 = vsel %vm971, %v997, 0
        %v1018 = vsel %vm971, %v999, 0
        %v1021 = vsel %vm971, %v1001, 0
        %v1024 = vsel %vm971, %v1003, 0
        %v1027 = vsel %vm971, %v1005, 0
        %v1030 = vsel %vm971, %v1007, 0
        %1032 = vmatprep.subr.mxu0 0.0
        %1033 = vmatpush1.msra.mxu0 %v1008
        %1034 = vmatprep.subr.mxu0 0.0
        %1035 = vmatpush1.msra.mxu0 %v1009
        %1036 = vmatprep.subr.mxu0 0.0
        %1037 = vmatpush1.msra.mxu0 %v1010
        %1038 = vmatprep.subr.mxu0 0.0
        %1039 = vmatpush1.msra.mxu0 %v1011
        %1040 = vmatprep.subr.mxu0 0.0
        %1041 = vmatpush1.msra.mxu0 %v1012
        %1042 = vmatprep.subr.mxu0 0.0
        %1043 = vmatpush1.msra.mxu0 %v1013
        %1044 = vmatprep.subr.mxu0 0.0
        %1045 = vmatpush1.msra.mxu0 0.0
        %1046 = vmatprep.subr.mxu0 0.0
        %1047 = vmatpush1.msra.mxu0 0.0
        %1048 = vmatprep.subr.mxu0 0.0
        %1049 = vmatpush1.msra.mxu0 0.0
        %1050 = vmatprep.subr.mxu0 0.0
        %1051 = vmatpush1.msra.mxu0 0.0
        %1052 = vmatprep.subr.mxu0 0.0
        %1053 = vmatpush1.msra.mxu0 0.0
        %1054 = vmatprep.subr.mxu0 0.0
        %1055 = vmatpush1.msra.mxu0 0.0
        %1056 = vmatprep.subr.mxu0 0.0
        %1057 = vmatpush1.msra.mxu0 0.0
        %1058 = vmatprep.subr.mxu0 0.0
        %1059 = vmatpush1.msra.mxu0 0.0
        %1060 = vmatprep.subr.mxu0 0.0
        %1061 = vmatpush1.msra.mxu0 0.0
        %1062 = vmatprep.subr.mxu0 0.0
        %1063 = vmatpush1.msra.mxu0 0.0
        %1064 = vmatprep.subr.mxu0 0.0
        %1065 = vmatpush1.msra.mxu0 0.0
        %1066 = vmatprep.subr.mxu0 0.0
        %1067 = vmatpush1.msra.mxu0 0.0
        %1068 = vmatprep.subr.mxu0 0.0
        %1069 = vmatpush1.msra.mxu0 0.0
        %1070 = vmatprep.subr.mxu0 0.0
        %1071 = vmatpush1.msra.mxu0 0.0
        %1072 = vmatprep.subr.mxu0 0.0
        %1073 = vmatpush1.msra.mxu0 0.0
        %1074 = vmatprep.subr.mxu0 0.0
        %1075 = vmatpush1.msra.mxu0 0.0
        %1076 = vmatprep.subr.mxu0 0.0
        %1077 = vmatpush1.msra.mxu0 0.0
        %1078 = vmatprep.subr.mxu0 0.0
        %1079 = vmatpush1.msra.mxu0 0.0
        %1080 = vmatprep.subr.mxu0 0.0
        %1081 = vmatpush1.msra.mxu0 0.0
        %1082 = vmatprep.subr.mxu0 0.0
        %1083 = vmatpush1.msra.mxu0 0.0
        %1084 = vmatprep.subr.mxu0 0.0
        %1085 = vmatpush1.msra.mxu0 0.0
        %1086 = vmatprep.subr.mxu0 0.0
        %1087 = vmatpush1.msra.mxu0 0.0
        %1088 = vmatprep.subr.mxu0 0.0
        %1089 = vmatpush1.msra.mxu0 0.0
        %1090 = vmatprep.subr.mxu0 0.0
        %1091 = vmatpush1.msra.mxu0 0.0
        %1092 = vmatprep.subr.mxu0 0.0
        %1093 = vmatpush1.msra.mxu0 0.0
        %1094 = vmatprep.subr.mxu0 0.0
        %1095 = vmatpush1.msra.mxu0 0.0
        %1096 = vmatprep.mubr.f32.mxu0 0.0
        %1097 = vmatmul.mubr.f32.gmra.mrb[0].mxu0 %v1015
        %v1098 = vpop.f32.mrb[0].mxu0
        %v1099 = vadd.f32 0.0, %v1098
        %v1100 = vpop.f32.mrb[0].mxu0
        %1101 = vmatprep.mubr.f32.mxu0 0.0
        %1102 = vmatmul.mubr.f32.gmra.mrb[0].mxu0 %v1018
        %v1103 = vpop.f32.mrb[0].mxu0
        %v1104 = vadd.f32 0.0, %v1103
        %v1105 = vpop.f32.mrb[0].mxu0
        %1106 = vmatprep.mubr.f32.mxu0 0.0
        %1107 = vmatmul.mubr.f32.gmra.mrb[0].mxu0 %v1021
        %v1108 = vpop.f32.mrb[0].mxu0
        %v1109 = vadd.f32 0.0, %v1108
        %v1110 = vpop.f32.mrb[0].mxu0
        %1111 = vmatprep.mubr.f32.mxu0 0.0
        %1112 = vmatmul.mubr.f32.gmra.mrb[0].mxu0 %v1024
        %v1113 = vpop.f32.mrb[0].mxu0
        %v1114 = vadd.f32 0.0, %v1113
        %v1115 = vpop.f32.mrb[0].mxu0
        %1116 = vmatprep.mubr.f32.mxu0 0.0
        %1117 = vmatmul.mubr.f32.gmra.mrb[0].mxu0 %v1027
        %v1118 = vpop.f32.mrb[0].mxu0
        %v1119 = vadd.f32 0.0, %v1118
        %v1120 = vpop.f32.mrb[0].mxu0
        %1121 = vmatprep.mubr.f32.mxu0 0.0
        %1122 = vmatmul.mubr.f32.gmra.mrb[0].mxu0 %v1030
        %v1123 = vpop.f32.mrb[0].mxu0
        %v1124 = vadd.f32 0.0, %v1123
        %v1125 = vpop.f32.mrb[0].mxu0
        %1126 = vdwg.mxu0
        %v1127 = vrcp.pop %v1099
        %v1128 = vrcp.pop %v1104
        %v1129 = vrcp.pop %v1109
        %v1130 = vrcp.pop %v1114
        %v1131 = vrcp.pop %v1119
        %v1132 = vrcp.pop %v1124
        %1134 = vset.pattern.permute.xlu0 16
        %1135 = vperm.xlu0 %1134, %v1127
        %v1136 = vpop.permute.xlu0 %1135
        %1139 = vset.pattern.permute.xlu0 16
        %1140 = vperm.xlu0 %1139, %v1128
        %v1141 = vpop.permute.xlu0 %1140
        %1144 = vset.pattern.permute.xlu0 16
        %1145 = vperm.xlu0 %1144, %v1129
        %v1146 = vpop.permute.xlu0 %1145
        %1149 = vset.pattern.permute.xlu0 16
        %1150 = vperm.xlu0 %1149, %v1130
        %v1151 = vpop.permute.xlu0 %1150
        %1154 = vset.pattern.permute.xlu0 16
        %1155 = vperm.xlu0 %1154, %v1131
        %v1156 = vpop.permute.xlu0 %1155
        %1159 = vset.pattern.permute.xlu0 16
        %1160 = vperm.xlu0 %1159, %v1132
        %v1161 = vpop.permute.xlu0 %1160
        %v1163 = vmul.f32 %v1099, %v1136
        %v1164 = vmul.f32 %v1104, %v1141
        %v1165 = vmul.f32 %v1109, %v1146
        %v1166 = vmul.f32 %v1114, %v1151
        %v1167 = vmul.f32 %v1119, %v1156
        %v1168 = vmul.f32 %v1124, %v1161
        %v1169 = vadd.f32 %v704, %v1163
        %v1170 = vadd.f32 %v705, %v1164
        %v1171 = vadd.f32 %v706, %v1165
        %v1172 = vadd.f32 %v707, %v1166
        %v1173 = vadd.f32 %v708, %v1167
        %v1174 = vadd.f32 %v709, %v1168
        %v1175 = vld [vmem:[%s8] sm:$0x1]
        %v1177 = vlaneseq
        %v1178 = vshrl.u32 %v1177, 7
        %v1179 = vsub.s32 0, %v1178
        %v1180 = vrot.slane %v1175, %v1179
        %v1182 = vadd.f32 %v1169, %v1180
        %v1183 = vadd.f32 %v1170, %v1180
        %v1184 = vadd.f32 %v1171, %v1180
        %v1185 = vadd.f32 %v1172, %v1180
        %v1186 = vadd.f32 %v1173, %v1180
        %v1187 = vadd.f32 %v1174, %v1180
        %1188 = vst.msk [vmem:[%s427] sm:$0xff] %vm719, %v1182
        %1189 = vst.msk [vmem:[%s427 + $0x8] sm:$0xff] %vm719, %v1183
        %1190 = vst.msk [vmem:[%s427 + $0x10] sm:$0xff] %vm719, %v1184
        %1191 = vst.msk [vmem:[%s427 + $0x18] sm:$0xff] %vm719, %v1185
        %1192 = vst.msk [vmem:[%s427 + $0x20] sm:$0xff] %vm719, %v1186
        %1193 = vst.msk [vmem:[%s427 + $0x28] sm:$0xff] %vm719, %v1187
        %v1194 = vld [vmem:[#allocation4] sm:$0x3]
        %v1196 = vsel %vm971, %v1194, 0
        %1198 = vmatprep.subr.mxu0 0.0
        %1199 = vmatpush1.xpose.msra.mxu0 %v1015
        %1200 = vmatprep.subr.mxu0 0.0
        %1201 = vmatpush1.xpose.msra.mxu0 %v1018
        %1202 = vmatprep.subr.mxu0 0.0
        %1203 = vmatpush1.xpose.msra.mxu0 %v1021
        %1204 = vmatprep.subr.mxu0 0.0
        %1205 = vmatpush1.xpose.msra.mxu0 %v1024
        %1206 = vmatprep.subr.mxu0 0.0
        %1207 = vmatpush1.xpose.msra.mxu0 %v1027
        %1208 = vmatprep.subr.mxu0 0.0
        %1209 = vmatpush1.xpose.msra.mxu0 %v1030
        %1210 = vmatprep.subr.mxu0 0.0
        %1211 = vmatpush1.xpose.msra.mxu0 0.0
        %1212 = vmatprep.subr.mxu0 0.0
        %1213 = vmatpush1.xpose.msra.mxu0 0.0
        %1214 = vmatprep.subr.mxu0 0.0
        %1215 = vmatpush1.xpose.msra.mxu0 0.0
        %1216 = vmatprep.subr.mxu0 0.0
        %1217 = vmatpush1.xpose.msra.mxu0 0.0
        %1218 = vmatprep.subr.mxu0 0.0
        %1219 = vmatpush1.xpose.msra.mxu0 0.0
        %1220 = vmatprep.subr.mxu0 0.0
        %1221 = vmatpush1.xpose.msra.mxu0 0.0
        %1222 = vmatprep.subr.mxu0 0.0
        %1223 = vmatpush1.xpose.msra.mxu0 0.0
        %1224 = vmatprep.subr.mxu0 0.0
        %1225 = vmatpush1.xpose.msra.mxu0 0.0
        %1226 = vmatprep.subr.mxu0 0.0
        %1227 = vmatpush1.xpose.msra.mxu0 0.0
        %1228 = vmatprep.subr.mxu0 0.0
        %1229 = vmatpush1.xpose.msra.mxu0 0.0
        %1230 = vmatprep.subr.mxu0 0.0
        %1231 = vmatpush1.xpose.msra.mxu0 0.0
        %1232 = vmatprep.subr.mxu0 0.0
        %1233 = vmatpush1.xpose.msra.mxu0 0.0
        %1234 = vmatprep.subr.mxu0 0.0
        %1235 = vmatpush1.xpose.msra.mxu0 0.0
        %1236 = vmatprep.subr.mxu0 0.0
        %1237 = vmatpush1.xpose.msra.mxu0 0.0
        %1238 = vmatprep.subr.mxu0 0.0
        %1239 = vmatpush1.xpose.msra.mxu0 0.0
        %1240 = vmatprep.subr.mxu0 0.0
        %1241 = vmatpush1.xpose.msra.mxu0 0.0
        %1242 = vmatprep.subr.mxu0 0.0
        %1243 = vmatpush1.xpose.msra.mxu0 0.0
        %1244 = vmatprep.subr.mxu0 0.0
        %1245 = vmatpush1.xpose.msra.mxu0 0.0
        %1246 = vmatprep.subr.mxu0 0.0
        %1247 = vmatpush1.xpose.msra.mxu0 0.0
        %1248 = vmatprep.subr.mxu0 0.0
        %1249 = vmatpush1.xpose.msra.mxu0 0.0
        %1250 = vmatprep.subr.mxu0 0.0
        %1251 = vmatpush1.xpose.msra.mxu0 0.0
        %1252 = vmatprep.subr.mxu0 0.0
        %1253 = vmatpush1.xpose.msra.mxu0 0.0
        %1254 = vmatprep.subr.mxu0 0.0
        %1255 = vmatpush1.xpose.msra.mxu0 0.0
        %1256 = vmatprep.subr.mxu0 0.0
        %1257 = vmatpush1.xpose.msra.mxu0 0.0
        %1258 = vmatprep.subr.mxu0 0.0
        %1259 = vmatpush1.xpose.msra.mxu0 0.0
        %1260 = vmatprep.subr.mxu0 0.0
        %1261 = vmatpush1.xpose.msra.mxu0 0.0
        %1262 = vmatprep.mubr.f32.mxu0 0.0
        %1263 = vmatmul.mubr.f32.gmra.mrb[0].mxu0 %v1196
        %v1264 = vpop.f32.mrb[0].mxu0
        %v1265 = vadd.f32 0.0, %v1264
        %v1266 = vpop.f32.mrb[0].mxu0
        %1267 = vdwg.mxu0
        %v1268 = vrcp.pop %v1265
        %s1269 = smul.u32 %s30, 48
        %v1270 = vlaneseq
        %v1271 = vand.u32 %v1270, 127
        %v1272 = vstv %s1269
        %v1273 = vadd.s32 %v1272, %v1271
        %vm1274 = vcmp.lt.s32.totalorder %v1273, 0
        %v1275 = vsub.s32 0, %v1273
        %v1276 = vsel %vm1274, %v1275, %v1273
        %v1277 = vshrl.u32 %v1276, 4
        %v1278 = vand.u32 %v1276, 15
        %v1279 = vsub.s32 0, %v1278
        %v1280 = vsel %vm1274, %v1279, %v1278
        %vm1281 = vcmp.ne.s32.totalorder %v1280, 0
        %vm1282 = vcmp.lt.s32.totalorder %v1280, 0
        %vm1283 = vmand %vm1282, %vm1281
        %v1284 = vadd.s32 %v1280, 16
        %v1285 = vsel %vm1283, %v1284, %v1280
        %v1286 = vcvt.s32.f32 %v1285
        %v1288 = vrot.slane %v1268, 1
        %v1290 = vmul.f32 %v1265, %v1288
        %v1291 = vsub.f32 %v1286, %v1290
        %s1292 = scalar_lea.vmem %s403, %s30 [#allocation5]
        %vm1293 = vcmask 385024
        %1294 = vst.msk [vmem:[%s1292] sm:$0x1] %vm1293, %v1291
        %s1295 = smul.u32 6, %s30
        %p1296 = scmp.lt.s32.totalorder %s29, 15
        %s1297 = scalar_select %p1296, %s29, 15
        %p1298 = scmp.lt.s32.totalorder %s1295, 5
        %s1299 = scalar_select %p1298, %s1295, 5
        %s1300 = smul.addr %s1297, 6
        %s1301 = sadd.s32 %s1299, %s1300
        %s1302 = smul.addr %s1301, 8
        %s1303 = scalar_lea.vmem %s9, %s1302
        %s1304 = sand.u32 %s274, 1
        %s1305 = scalar_lea.sflag [#allocation6], %s1304
        %s1306 = sand.u32 %s274, 1
        %s1307 = scalar_lea.vmem [#allocation5], %s1306
        // Predicated region
        $region61: #{tpu_custom_call.1} parent=55 // pred_check
          %p1308 = pneg %p258
        $region62: #{tpu_custom_call.1} parent=55 // pred_check_branch
          %1310 = sbr.rel (%p1308) target = $region64
        $region63: #{tpu_custom_call.1} parent=55 // pred_region
          %s1311 = smul.u32 6, %s30
        $region64: #{tpu_custom_call.1} parent=55 // pred_fallthru
          _
        // Predicated region
        $region65: #{tpu_custom_call.1} parent=55 // pred_check
          %p1312 = pneg %p284
        $region66: #{tpu_custom_call.1} parent=55 // pred_check_branch
          %1314 = sbr.rel (%p1312) target = $region68
        $region67: #{tpu_custom_call.1} parent=55 // pred_region
          %s1316 = ssub.s32 16, 16
          %1317 = vsyncadd %s1305, %s1316
          %s1318 = smul.addr %s29, 16
          %s1319 = scalar_lea.hbm %s10, %s1318
          %s1321 = sshll.u32 %s1307, 4
          %s1322 = int_to_ptr.vmem [resolvable:$true] %s1321
          %1324 = dma.vmem_to_hbm [thread:$0]  %s1322, 16, %s1319, %s1305
        $region68: #{tpu_custom_call.1} parent=55 // pred_fallthru
          _
      $region56: #{tpu_custom_call.1} parent=5 // pred_fallthru
        _
      %p1325 = scmp.le.s32.totalorder 2, %s20
      // Predicated region
      $region69: #{tpu_custom_call.1} parent=5 // pred_check
        %p1326 = pneg %p1325
      $region70: #{tpu_custom_call.1} parent=5 // pred_check_branch
        %1328 = sbr.rel (%p1326) target = $region72
      $region71: #{tpu_custom_call.1} parent=5 // pred_region
        %s1329 = ssub.s32 %s20, 2
        // Predicated region
        $region73: #{tpu_custom_call.1} parent=71 // pred_check
          %p1330 = pneg %p264
        $region74: #{tpu_custom_call.1} parent=71 // pred_check_branch
          %1332 = sbr.rel (%p1330) target = $region76
        $region75: #{tpu_custom_call.1} parent=71 // pred_region
          %s1333 = smul.u32 6, %s32
          %p1334 = scmp.lt.s32.totalorder %s31, 15
          %s1335 = scalar_select %p1334, %s31, 15
          %p1336 = scmp.lt.s32.totalorder %s1333, 5
          %s1337 = scalar_select %p1336, %s1333, 5
          %s1338 = smul.addr %s1335, 6
          %s1339 = sadd.s32 %s1337, %s1338
          %s1340 = smul.addr %s1339, 8
          %s1341 = scalar_lea.vmem %s9, %s1340
        $region76: #{tpu_custom_call.1} parent=71 // pred_fallthru
          _
        // Predicated region
        $region77: #{tpu_custom_call.1} parent=71 // pred_check
          %p1342 = pneg %p290
        $region78: #{tpu_custom_call.1} parent=71 // pred_check_branch
          %1344 = sbr.rel (%p1342) target = $region80
        $region79: #{tpu_custom_call.1} parent=71 // pred_region
          %s1345 = sand.u32 %s275, 1
          %s1346 = scalar_lea.sflag [#allocation6], %s1345
          %s1347 = sand.u32 %s275, 1
          %s1348 = scalar_lea.vmem [#allocation5], %s1347
          %1349 = dma.done %s1346, 16
        $region80: #{tpu_custom_call.1} parent=71 // pred_fallthru
          _
      $region72: #{tpu_custom_call.1} parent=5 // pred_fallthru
        _
    $region6: #{tpu_custom_call.1} parent=1 // loop_footer
      %s24 = sadd.s32 1, %s20
    $region7: #{tpu_custom_call.1} parent=1 // loop_footer_branch
      %19 = sbr.rel target = $region3
    $region8: #{tpu_custom_call.1} parent=1 // loop_exit
      _
    %1350 = vsyncpa [#allocation6], 1
    %s1351 = scalar_lea.sflag [#allocation6], 1
    %1352 = vsyncpa %s1351, 1

</llo_original>
